<compile_context>
chip_gen: v5e
topology: v5e:2x2
jax: 0.10.0
libtpu: 0.0.40
codegen_flags: <defaults>
</compile_context>

<pallas_src>
import numpy as np
import jax
import jax.numpy as jnp
from jax import lax
from jax.experimental import pallas as pl
from jax.experimental.pallas import tpu as pltpu

C_IMG, H_IMG, W_IMG = 3, 5, 7
SPAT = H_IMG * W_IMG            # 35 spatial positions per channel
C_PAD = 40                      # per-channel sublane padding (multiple of 8)
F = C_IMG * C_PAD               # 120 feature rows, channel c at rows [c*40, c*40+35)
_GRAY_W = (0.2989, 0.587, 0.114)   # torchvision rgb_to_grayscale weights
_MAX_TN = 2048                  # images (lanes) per grid block


def _round_up(x, m):
    return ((x + m - 1) // m) * m


def _reflect_taps_left(length):
    """S_d[o, i] = 1 iff reflect(o + d) == i  (reflect pad width 1), d in (-1,0,1)."""
    mats = []
    for d in (-1, 0, 1):
        m = np.zeros((length, length), np.float32)
        for o in range(length):
            i = o + d
            if i < 0:
                i = -i
            elif i >= length:
                i = 2 * length - 2 - i
            m[o, i] = 1.0
        mats.append(m)
    return mats


_S_H = _reflect_taps_left(H_IMG)
_S_W = _reflect_taps_left(W_IMG)
# Horizontal flip as a left-multiply permutation of the 35 spatial features.
_FLIP35 = np.kron(np.eye(H_IMG, dtype=np.float32),
                  np.fliplr(np.eye(W_IMG, dtype=np.float32)))
_EYE35 = np.eye(SPAT, dtype=np.float32)


# ---------------------------------------------------------------------------
# In-kernel helpers: values are (F=120, tn) with channels at sublane offsets
# 0 / 40 / 80 (8-aligned -> no cross-sublane shifts), images on lanes.
# ---------------------------------------------------------------------------
def _gray(im):
    """(F, tn) -> (35, tn) grayscale (torchvision weights)."""
    return (_GRAY_W[0] * im[0:SPAT, :]
            + _GRAY_W[1] * im[C_PAD:C_PAD + SPAT, :]
            + _GRAY_W[2] * im[2 * C_PAD:2 * C_PAD + SPAT, :])


def _expand3(g):
    """(35, tn) -> (F, tn): replicate into the three channel slots (pad rows 0)."""
    z = jnp.zeros((C_PAD - SPAT, g.shape[1]), jnp.float32)
    g40 = jnp.concatenate([g, z], axis=0)
    return jnp.concatenate([g40, g40, g40], axis=0)


def _adjust_hue(im, hue_factor):
    """torchvision F.adjust_hue on a (F, tn) transposed slab."""
    r = im[0:SPAT, :]
    g = im[C_PAD:C_PAD + SPAT, :]
    b = im[2 * C_PAD:2 * C_PAD + SPAT, :]

    maxc = jnp.maximum(jnp.maximum(r, g), b)
    minc = jnp.minimum(jnp.minimum(r, g), b)
    eqc = maxc == minc
    cr = maxc - minc
    ones = jnp.ones_like(maxc)
    # divides -> EUP approx reciprocals + VPU multiplies
    s = cr * pl.reciprocal(jnp.where(eqc, ones, maxc), approx=True)
    inv_cr = pl.reciprocal(jnp.where(eqc, ones, cr), approx=True)
    rc = (maxc - r) * inv_cr
    gc = (maxc - g) * inv_cr
    bc = (maxc - b) * inv_cr
    hr = (maxc == r).astype(jnp.float32) * (bc - gc)
    hg = ((maxc == g) & (maxc != r)).astype(jnp.float32) * (2.0 + rc - bc)
    hb = ((maxc != g) & (maxc != r)).astype(jnp.float32) * (4.0 + gc - rc)
    h = (hr + hg + hb) * (1.0 / 6.0) + 1.0
    h = h - jnp.floor(h)            # fmod(., 1.0), argument is positive
    h = h + hue_factor
    h = h - jnp.floor(h)            # wrap back into [0, 1)

    h6 = h * 6.0
    idx = jnp.clip(jnp.floor(h6), 0.0, 5.0)
    f = h6 - jnp.floor(h6)
    v = maxc
    p = v * (1.0 - s)
    q = v * (1.0 - s * f)
    t = v * (1.0 - s * (1.0 - f))

    # Shared masks, computed once and reused for all three output channels.
    m0 = idx == 0.0
    m1 = idx == 1.0
    m2 = idx == 2.0
    m3 = idx == 3.0
    m4 = idx == 4.0

    def sel(c0, c1, c2, c3, c4, c5):
        return jnp.where(m0, c0, jnp.where(m1, c1, jnp.where(m2, c2,
               jnp.where(m3, c3, jnp.where(m4, c4, c5)))))

    r_o = sel(v, q, p, p, t, v)
    g_o = sel(t, v, v, q, p, p)
    b_o = sel(p, p, t, v, v, q)

    z = jnp.zeros((C_PAD - SPAT, r_o.shape[1]), jnp.float32)
    return jnp.concatenate([r_o, z, g_o, z, b_o, z], axis=0)


# ---------------------------------------------------------------------------
# Kernel: one load, value pipeline, one store.
# ---------------------------------------------------------------------------
def _simsiam_kernel(fp_ref, ip_ref, mop_ref, x_ref, o_ref):
    # fp_ref  SMEM f32[4]: [brightness, contrast, saturation, hue] factors
    # ip_ref  SMEM i32[6]: [op0, op1, op2, op3, gray_on, spatial_on]
    #         op* in {0:brightness, 1:contrast, 2:saturation, 3:hue, 4:identity}
    # mop_ref VMEM f32[F, F]: composed flip/blur operator (left-multiply)
    img = x_ref[...].astype(jnp.float32)                       # (F, tn)

    def _brightness(im):
        return jnp.clip(fp_ref[0] * im, 0.0, 1.0)

    def _contrast(im):
        mean = jnp.mean(_gray(im), axis=0, keepdims=True)      # per-image (1, tn)
        return jnp.clip(fp_ref[1] * im + (1.0 - fp_ref[1]) * mean, 0.0, 1.0)

    def _saturation(im):
        g3 = _expand3(_gray(im))
        return jnp.clip(fp_ref[2] * im + (1.0 - fp_ref[2]) * g3, 0.0, 1.0)

    def _hue(im):
        return _adjust_hue(im, fp_ref[3])

    def _identity(im):
        return im

    # ColorJitter (RandomApply p=0.8) with random op order: single value pipeline,
    # each op's code emitted once; "jitter off" arrives as four identity slots.
    def _slot(s, im):
        return lax.switch(ip_ref[s],
                          (_brightness, _contrast, _saturation, _hue, _identity),
                          im)

    img = lax.fori_loop(0, 4, _slot, img)

    # RandomGrayscale(p=0.2): cheap, compute + value-level select.
    img = jnp.where(ip_ref[4] == 1, _expand3(_gray(img)), img)

    # RandomHorizontalFlip + GaussianBlur as one block-diagonal linear operator
    # on the padded per-channel spatial grid (MXU is otherwise idle).
    blurred = jnp.dot(mop_ref[...], img, preferred_element_type=jnp.float32)
    img = jnp.where(ip_ref[5] == 1, blurred, img)

    o_ref[...] = img.astype(o_ref.dtype)                       # single store


# ---------------------------------------------------------------------------
# Wrapper
# ---------------------------------------------------------------------------
def simsiam_transform(inp, key):
    """inp: (bs, ntime, res*3, 5, 7) float tensor. Returns same shape/dtype."""
    bs, ntime, rc, h, w = inp.shape
    assert h == H_IMG and w == W_IMG and rc % C_IMG == 0
    res = rc // C_IMG
    n = bs * ntime * res

    ks = jax.random.split(key, 10)
    flip_on = jax.random.uniform(ks[0]) < 0.5
    jit_on = jax.random.uniform(ks[1]) < 0.8
    gray_on = (jax.random.uniform(ks[2]) < 0.2).astype(jnp.int32)
    blur_on = jax.random.uniform(ks[3]) < 0.5
    b_fac = jax.random.uniform(ks[4], minval=0.6, maxval=1.4)
    c_fac = jax.random.uniform(ks[5], minval=0.6, maxval=1.4)
    s_fac = jax.random.uniform(ks[6], minval=0.6, maxval=1.4)
    h_fac = jax.random.uniform(ks[7], minval=-0.1, maxval=0.1)
    perm = jax.random.permutation(ks[8], 4).astype(jnp.int32)
    sigma = jax.random.uniform(ks[9], minval=0.1, maxval=2.0)

    # ColorJitter op slots: the random permutation when applied, identity otherwise.
    ops = jnp.where(jit_on, perm, jnp.full((4,), 4, jnp.int32))

    # Flip (first op) commutes with all pointwise jitter/gray ops, so compose it
    # with the symmetric reflect-pad 3x3 blur into one operator applied last:
    # out = (B or I) @ (P or I) per channel.
    taps = jnp.array([-1.0, 0.0, 1.0], dtype=jnp.float32)
    pdf = jnp.exp(-0.5 * (taps / sigma) ** 2)
    k1d = pdf / jnp.sum(pdf)          # torchvision _get_gaussian_kernel1d, ksize=3
    a_h = k1d[0] * _S_H[0] + k1d[1] * _S_H[1] + k1d[2] * _S_H[2]
    a_w = k1d[0] * _S_W[0] + k1d[1] * _S_W[1] + k1d[2] * _S_W[2]
    blur35 = jnp.kron(a_h, a_w)
    eye35 = jnp.asarray(_EYE35)
    spat = (jnp.where(blur_on, blur35, eye35)
            @ jnp.where(flip_on, jnp.asarray(_FLIP35), eye35))         # (35, 35)
    spat40 = jnp.pad(spat, ((0, C_PAD - SPAT), (0, C_PAD - SPAT)))     # (40, 40)
    mop = jnp.kron(jnp.eye(C_IMG, dtype=jnp.float32), spat40)          # (120, 120)
    spatial_on = (flip_on | blur_on).astype(jnp.int32)

    fparams = jnp.stack([b_fac, c_fac, s_fac, h_fac]).astype(jnp.float32)
    iparams = jnp.concatenate(
        [ops, jnp.stack([gray_on, spatial_on])]).astype(jnp.int32)

    # Tiling: images ride lanes; >= 2 even tiles so v7x's two TensorCores are fed.
    ntiles = max(2, -(-n // _MAX_TN))
    ntiles += ntiles % 2
    tn = _round_up(-(-n // ntiles), 128)
    n_pad = tn * ntiles

    # Relayout 'bs ntime (res C) H W -> (bs ntime res) C (H W)' then to the
    # channel-padded transposed slab (120, n_pad); native dtype, cast in-kernel.
    x = inp.reshape(n, C_IMG, SPAT)
    x = jnp.pad(x, ((0, n_pad - n), (0, 0), (0, C_PAD - SPAT)))
    x_t = x.reshape(n_pad, F).T                                        # (120, n_pad)

    itemsize = jnp.dtype(inp.dtype).itemsize
    out_t = pl.pallas_call(
        _simsiam_kernel,
        out_shape=jax.ShapeDtypeStruct((F, n_pad), inp.dtype),
        grid=(ntiles,),
        in_specs=[
            pl.BlockSpec(memory_space=pltpu.MemorySpace.SMEM),   # fparams
            pl.BlockSpec(memory_space=pltpu.MemorySpace.SMEM),   # iparams
            pl.BlockSpec((F, F), lambda i: (0, 0)),              # flip/blur operator
            pl.BlockSpec((F, tn), lambda i: (0, i)),             # image block
        ],
        out_specs=pl.BlockSpec((F, tn), lambda i: (0, i)),
        compiler_params=pltpu.CompilerParams(
            dimension_semantics=("parallel",)),
        cost_estimate=pl.CostEstimate(
            flops=int(n_pad) * (2 * F * F + 256 * F),
            transcendentals=2 * int(n_pad) * SPAT,
            bytes_accessed=2 * int(n_pad) * F * itemsize + F * F * 4),
    )(fparams, iparams, mop, x_t)

    y = out_t.T[:n].reshape(n, C_IMG, C_PAD)[:, :, :SPAT]
    return y.reshape(bs, ntime, rc, H_IMG, W_IMG)


if __name__ == "__main__":
    key = jax.random.PRNGKey(0)
    k_inp, k_aug = jax.random.split(key)
    bs, ntime, res = 2, 2, 2
    inp = jax.random.uniform(
        k_inp, (bs, ntime, res * C_IMG, H_IMG, W_IMG), dtype=jnp.float32)
    out = jax.jit(simsiam_transform)(inp, k_aug)
    jax.block_until_ready(out)
    assert out.shape == inp.shape and out.dtype == inp.dtype
    assert bool(jnp.all(jnp.isfinite(out)))
    print("KERNEL_OK")
</pallas_src>

<mosaic_0001>
module attributes {stable_mosaic.version = 11 : i64} {
  func.func @_simsiam_kernel(%arg0: i32, %arg1: memref<4xf32, #tpu.memory_space<smem>>, %arg2: memref<6xi32, #tpu.memory_space<smem>>, %arg3: memref<120x120xf32, #tpu.memory_space<vmem>>, %arg4: memref<120x128xf32, #tpu.memory_space<vmem>>, %arg5: memref<120x128xf32, #tpu.memory_space<vmem>>) attributes {dimension_semantics = [#tpu.dimension_semantics<parallel>], iteration_bounds = array<i64: 2>, scalar_prefetch = 0 : i64, scratch_operands = 0 : i64, tpu.core_type = #tpu.core_type<tc>, window_params = [{transform_indices = @transform_0, window_bounds = array<i64: 4>}, {transform_indices = @transform_1, window_bounds = array<i64: 6>}, {pipeline_mode = #tpu.pipeline_mode<synchronous>, transform_indices = @transform_2, window_bounds = array<i64: 120, 120>}, {transform_indices = @transform_3, window_bounds = array<i64: 120, 128>}, {transform_indices = @transform_4, window_bounds = array<i64: 120, 128>}]} {
    %c0 = arith.constant 0 : index
    %c0_0 = arith.constant 0 : index
    %0 = vector.load %arg4[%c0, %c0_0] : memref<120x128xf32, #tpu.memory_space<vmem>>, vector<120x128xf32>
    %c0_i32 = arith.constant 0 : i32
    %c4_i32 = arith.constant 4 : i32
    %1 = arith.addi %c0_i32, %c4_i32 : i32
    %c1_i32 = arith.constant 1 : i32
    %2 = scf.for %arg6 = %c0_i32 to %1 step %c1_i32 iter_args(%arg7 = %0) -> (vector<120x128xf32>)  : i32 {
      %26 = arith.index_cast %arg6 : i32 to index
      %27 = memref.load %arg2[%26] : memref<6xi32, #tpu.memory_space<smem>>
      %c0_i32_12 = arith.constant 0 : i32
      %c4_i32_13 = arith.constant 4 : i32
      %28 = arith.maxsi %27, %c0_i32_12 : i32
      %29 = arith.minsi %28, %c4_i32_13 : i32
      %c0_i32_14 = arith.constant 0 : i32
      %30 = arith.cmpi ne, %29, %c0_i32_14 : i32
      %31 = scf.if %30 -> (vector<120x128xf32>) {
        %c1_i32_15 = arith.constant 1 : i32
        %32 = arith.subi %29, %c1_i32_15 : i32
        %c0_i32_16 = arith.constant 0 : i32
        %33 = arith.cmpi ne, %32, %c0_i32_16 : i32
        %34 = scf.if %33 -> (vector<120x128xf32>) {
          %c1_i32_17 = arith.constant 1 : i32
          %35 = arith.subi %32, %c1_i32_17 : i32
          %c0_i32_18 = arith.constant 0 : i32
          %36 = arith.cmpi ne, %35, %c0_i32_18 : i32
          %37 = scf.if %36 -> (vector<120x128xf32>) {
            %c1_i32_19 = arith.constant 1 : i32
            %38 = arith.subi %35, %c1_i32_19 : i32
            %c0_i32_20 = arith.constant 0 : i32
            %39 = arith.cmpi ne, %38, %c0_i32_20 : i32
            %40 = scf.if %39 -> (vector<120x128xf32>) {
              scf.yield %arg7 : vector<120x128xf32>
            } else {
              %c3 = arith.constant 3 : index
              %41 = memref.load %arg1[%c3] : memref<4xf32, #tpu.memory_space<smem>>
              %42 = vector.extract_strided_slice %arg7 {offsets = [0, 0], sizes = [35, 128], strides = [1, 1]} : vector<120x128xf32> to vector<35x128xf32>
              %43 = vector.extract_strided_slice %arg7 {offsets = [40, 0], sizes = [35, 128], strides = [1, 1]} : vector<120x128xf32> to vector<35x128xf32>
              %44 = vector.extract_strided_slice %arg7 {offsets = [80, 0], sizes = [35, 128], strides = [1, 1]} : vector<120x128xf32> to vector<35x128xf32>
              %45 = arith.maximumf %42, %43 : vector<35x128xf32>
              %46 = arith.maximumf %45, %44 : vector<35x128xf32>
              %47 = arith.minimumf %42, %43 : vector<35x128xf32>
              %48 = arith.minimumf %47, %44 : vector<35x128xf32>
              %49 = arith.cmpf oeq, %46, %48 : vector<35x128xf32>
              %50 = arith.subf %46, %48 : vector<35x128xf32>
              %cst_21 = arith.constant 1.000000e+00 : f32
              %51 = vector.broadcast %cst_21 : f32 to vector<35x128xf32>
              %52 = arith.select %49, %51, %46 : vector<35x128xi1>, vector<35x128xf32>
              %53 = tpu.reciprocal %52 {approx = true} : vector<35x128xf32> -> vector<35x128xf32>
              %54 = arith.mulf %50, %53 : vector<35x128xf32>
              %55 = arith.select %49, %51, %50 : vector<35x128xi1>, vector<35x128xf32>
              %56 = tpu.reciprocal %55 {approx = true} : vector<35x128xf32> -> vector<35x128xf32>
              %57 = arith.subf %46, %42 : vector<35x128xf32>
              %58 = arith.mulf %57, %56 : vector<35x128xf32>
              %59 = arith.subf %46, %43 : vector<35x128xf32>
              %60 = arith.mulf %59, %56 : vector<35x128xf32>
              %61 = arith.subf %46, %44 : vector<35x128xf32>
              %62 = arith.mulf %61, %56 : vector<35x128xf32>
              %63 = arith.cmpf oeq, %46, %42 : vector<35x128xf32>
              %64 = arith.extui %63 : vector<35x128xi1> to vector<35x128xi32>
              %65 = arith.sitofp %64 : vector<35x128xi32> to vector<35x128xf32>
              %66 = arith.subf %62, %60 : vector<35x128xf32>
              %67 = arith.mulf %65, %66 : vector<35x128xf32>
              %68 = arith.cmpf oeq, %46, %43 : vector<35x128xf32>
              %69 = arith.cmpf one, %46, %42 : vector<35x128xf32>
              %70 = arith.andi %68, %69 : vector<35x128xi1>
              %71 = arith.extui %70 : vector<35x128xi1> to vector<35x128xi32>
              %72 = arith.sitofp %71 : vector<35x128xi32> to vector<35x128xf32>
              %cst_22 = arith.constant 2.000000e+00 : f32
              %73 = vector.broadcast %cst_22 : f32 to vector<35x128xf32>
              %74 = arith.addf %73, %58 : vector<35x128xf32>
              %75 = arith.subf %74, %62 : vector<35x128xf32>
              %76 = arith.mulf %72, %75 : vector<35x128xf32>
              %77 = arith.cmpf one, %46, %43 : vector<35x128xf32>
              %78 = arith.cmpf one, %46, %42 : vector<35x128xf32>
              %79 = arith.andi %77, %78 : vector<35x128xi1>
              %80 = arith.extui %79 : vector<35x128xi1> to vector<35x128xi32>
              %81 = arith.sitofp %80 : vector<35x128xi32> to vector<35x128xf32>
              %cst_23 = arith.constant 4.000000e+00 : f32
              %82 = vector.broadcast %cst_23 : f32 to vector<35x128xf32>
              %83 = arith.addf %82, %60 : vector<35x128xf32>
              %84 = arith.subf %83, %58 : vector<35x128xf32>
              %85 = arith.mulf %81, %84 : vector<35x128xf32>
              %86 = arith.addf %67, %76 : vector<35x128xf32>
              %87 = arith.addf %86, %85 : vector<35x128xf32>
              %cst_24 = arith.constant 0.166666672 : f32
              %88 = vector.broadcast %cst_24 : f32 to vector<35x128xf32>
              %89 = arith.mulf %87, %88 : vector<35x128xf32>
              %cst_25 = arith.constant 1.000000e+00 : f32
              %90 = vector.broadcast %cst_25 : f32 to vector<35x128xf32>
              %91 = arith.addf %89, %90 : vector<35x128xf32>
              %92 = math.floor %91 : vector<35x128xf32>
              %93 = arith.subf %91, %92 : vector<35x128xf32>
              %94 = vector.broadcast %41 : f32 to vector<35x128xf32>
              %95 = arith.addf %93, %94 : vector<35x128xf32>
              %96 = math.floor %95 : vector<35x128xf32>
              %97 = arith.subf %95, %96 : vector<35x128xf32>
              %cst_26 = arith.constant 6.000000e+00 : f32
              %98 = vector.broadcast %cst_26 : f32 to vector<35x128xf32>
              %99 = arith.mulf %97, %98 : vector<35x128xf32>
              %100 = math.floor %99 : vector<35x128xf32>
              %cst_27 = arith.constant 0.000000e+00 : f32
              %cst_28 = arith.constant 5.000000e+00 : f32
              %101 = vector.broadcast %cst_27 : f32 to vector<35x128xf32>
              %102 = arith.maximumf %101, %100 : vector<35x128xf32>
              %103 = vector.broadcast %cst_28 : f32 to vector<35x128xf32>
              %104 = arith.minimumf %103, %102 : vector<35x128xf32>
              %105 = math.floor %99 : vector<35x128xf32>
              %106 = arith.subf %99, %105 : vector<35x128xf32>
              %cst_29 = arith.constant 1.000000e+00 : f32
              %107 = vector.broadcast %cst_29 : f32 to vector<35x128xf32>
              %108 = arith.subf %107, %54 : vector<35x128xf32>
              %109 = arith.mulf %46, %108 : vector<35x128xf32>
              %110 = arith.mulf %54, %106 : vector<35x128xf32>
              %cst_30 = arith.constant 1.000000e+00 : f32
              %111 = vector.broadcast %cst_30 : f32 to vector<35x128xf32>
              %112 = arith.subf %111, %110 : vector<35x128xf32>
              %113 = arith.mulf %46, %112 : vector<35x128xf32>
              %cst_31 = arith.constant 1.000000e+00 : f32
              %114 = vector.broadcast %cst_31 : f32 to vector<35x128xf32>
              %115 = arith.subf %114, %106 : vector<35x128xf32>
              %116 = arith.mulf %54, %115 : vector<35x128xf32>
              %cst_32 = arith.constant 1.000000e+00 : f32
              %117 = vector.broadcast %cst_32 : f32 to vector<35x128xf32>
              %118 = arith.subf %117, %116 : vector<35x128xf32>
              %119 = arith.mulf %46, %118 : vector<35x128xf32>
              %cst_33 = arith.constant 0.000000e+00 : f32
              %120 = vector.broadcast %cst_33 : f32 to vector<35x128xf32>
              %121 = arith.cmpf oeq, %104, %120 : vector<35x128xf32>
              %cst_34 = arith.constant 1.000000e+00 : f32
              %122 = vector.broadcast %cst_34 : f32 to vector<35x128xf32>
              %123 = arith.cmpf oeq, %104, %122 : vector<35x128xf32>
              %cst_35 = arith.constant 2.000000e+00 : f32
              %124 = vector.broadcast %cst_35 : f32 to vector<35x128xf32>
              %125 = arith.cmpf oeq, %104, %124 : vector<35x128xf32>
              %cst_36 = arith.constant 3.000000e+00 : f32
              %126 = vector.broadcast %cst_36 : f32 to vector<35x128xf32>
              %127 = arith.cmpf oeq, %104, %126 : vector<35x128xf32>
              %cst_37 = arith.constant 4.000000e+00 : f32
              %128 = vector.broadcast %cst_37 : f32 to vector<35x128xf32>
              %129 = arith.cmpf oeq, %104, %128 : vector<35x128xf32>
              %130 = arith.select %129, %119, %46 : vector<35x128xi1>, vector<35x128xf32>
              %131 = arith.select %127, %109, %130 : vector<35x128xi1>, vector<35x128xf32>
              %132 = arith.select %125, %109, %131 : vector<35x128xi1>, vector<35x128xf32>
              %133 = arith.select %123, %113, %132 : vector<35x128xi1>, vector<35x128xf32>
              %134 = arith.select %121, %46, %133 : vector<35x128xi1>, vector<35x128xf32>
              %135 = arith.select %129, %109, %109 : vector<35x128xi1>, vector<35x128xf32>
              %136 = arith.select %127, %113, %135 : vector<35x128xi1>, vector<35x128xf32>
              %137 = arith.select %125, %46, %136 : vector<35x128xi1>, vector<35x128xf32>
              %138 = arith.select %123, %46, %137 : vector<35x128xi1>, vector<35x128xf32>
              %139 = arith.select %121, %119, %138 : vector<35x128xi1>, vector<35x128xf32>
              %140 = arith.select %129, %46, %113 : vector<35x128xi1>, vector<35x128xf32>
              %141 = arith.select %127, %46, %140 : vector<35x128xi1>, vector<35x128xf32>
              %142 = arith.select %125, %119, %141 : vector<35x128xi1>, vector<35x128xf32>
              %143 = arith.select %123, %109, %142 : vector<35x128xi1>, vector<35x128xf32>
              %144 = arith.select %121, %109, %143 : vector<35x128xi1>, vector<35x128xf32>
              %cst_38 = arith.constant 0.000000e+00 : f32
              %145 = vector.broadcast %cst_38 : f32 to vector<5x128xf32>
              %146 = tpu.concatenate %134, %145, %139, %145, %144, %145 in 0 : vector<35x128xf32>, vector<5x128xf32>, vector<35x128xf32>, vector<5x128xf32>, vector<35x128xf32>, vector<5x128xf32> -> vector<120x128xf32>
              scf.yield %146 : vector<120x128xf32>
            }
            scf.yield %40 : vector<120x128xf32>
          } else {
            %38 = vector.extract_strided_slice %arg7 {offsets = [0, 0], sizes = [35, 128], strides = [1, 1]} : vector<120x128xf32> to vector<35x128xf32>
            %cst_19 = arith.constant 2.989000e-01 : f32
            %39 = vector.broadcast %cst_19 : f32 to vector<35x128xf32>
            %40 = arith.mulf %39, %38 : vector<35x128xf32>
            %41 = vector.extract_strided_slice %arg7 {offsets = [40, 0], sizes = [35, 128], strides = [1, 1]} : vector<120x128xf32> to vector<35x128xf32>
            %cst_20 = arith.constant 5.870000e-01 : f32
            %42 = vector.broadcast %cst_20 : f32 to vector<35x128xf32>
            %43 = arith.mulf %42, %41 : vector<35x128xf32>
            %44 = arith.addf %40, %43 : vector<35x128xf32>
            %45 = vector.extract_strided_slice %arg7 {offsets = [80, 0], sizes = [35, 128], strides = [1, 1]} : vector<120x128xf32> to vector<35x128xf32>
            %cst_21 = arith.constant 1.140000e-01 : f32
            %46 = vector.broadcast %cst_21 : f32 to vector<35x128xf32>
            %47 = arith.mulf %46, %45 : vector<35x128xf32>
            %48 = arith.addf %44, %47 : vector<35x128xf32>
            %cst_22 = arith.constant 0.000000e+00 : f32
            %49 = vector.broadcast %cst_22 : f32 to vector<5x128xf32>
            %50 = tpu.concatenate %48, %49 in 0 : vector<35x128xf32>, vector<5x128xf32> -> vector<40x128xf32>
            %51 = tpu.concatenate %50, %50, %50 in 0 : vector<40x128xf32>, vector<40x128xf32>, vector<40x128xf32> -> vector<120x128xf32>
            %c2 = arith.constant 2 : index
            %52 = memref.load %arg1[%c2] : memref<4xf32, #tpu.memory_space<smem>>
            %53 = vector.broadcast %52 : f32 to vector<120x128xf32>
            %54 = arith.mulf %53, %arg7 : vector<120x128xf32>
            %c2_23 = arith.constant 2 : index
            %55 = memref.load %arg1[%c2_23] : memref<4xf32, #tpu.memory_space<smem>>
            %cst_24 = arith.constant 1.000000e+00 : f32
            %56 = arith.subf %cst_24, %55 : f32
            %57 = vector.broadcast %56 : f32 to vector<120x128xf32>
            %58 = arith.mulf %57, %51 : vector<120x128xf32>
            %59 = arith.addf %54, %58 : vector<120x128xf32>
            %cst_25 = arith.constant 0.000000e+00 : f32
            %cst_26 = arith.constant 1.000000e+00 : f32
            %60 = vector.broadcast %cst_25 : f32 to vector<120x128xf32>
            %61 = arith.maximumf %60, %59 : vector<120x128xf32>
            %62 = vector.broadcast %cst_26 : f32 to vector<120x128xf32>
            %63 = arith.minimumf %62, %61 : vector<120x128xf32>
            scf.yield %63 : vector<120x128xf32>
          }
          scf.yield %37 : vector<120x128xf32>
        } else {
          %35 = vector.extract_strided_slice %arg7 {offsets = [0, 0], sizes = [35, 128], strides = [1, 1]} : vector<120x128xf32> to vector<35x128xf32>
          %cst_17 = arith.constant 2.989000e-01 : f32
          %36 = vector.broadcast %cst_17 : f32 to vector<35x128xf32>
          %37 = arith.mulf %36, %35 : vector<35x128xf32>
          %38 = vector.extract_strided_slice %arg7 {offsets = [40, 0], sizes = [35, 128], strides = [1, 1]} : vector<120x128xf32> to vector<35x128xf32>
          %cst_18 = arith.constant 5.870000e-01 : f32
          %39 = vector.broadcast %cst_18 : f32 to vector<35x128xf32>
          %40 = arith.mulf %39, %38 : vector<35x128xf32>
          %41 = arith.addf %37, %40 : vector<35x128xf32>
          %42 = vector.extract_strided_slice %arg7 {offsets = [80, 0], sizes = [35, 128], strides = [1, 1]} : vector<120x128xf32> to vector<35x128xf32>
          %cst_19 = arith.constant 1.140000e-01 : f32
          %43 = vector.broadcast %cst_19 : f32 to vector<35x128xf32>
          %44 = arith.mulf %43, %42 : vector<35x128xf32>
          %45 = arith.addf %41, %44 : vector<35x128xf32>
          %cst_20 = arith.constant dense<0.000000e+00> : vector<128xf32>
          %46 = vector.multi_reduction <add>, %45, %cst_20 [0] : vector<35x128xf32> to vector<128xf32>
          %47 = vector.shape_cast %46 : vector<128xf32> to vector<1x128xf32>
          %cst_21 = arith.constant 3.500000e+01 : f32
          %48 = vector.broadcast %cst_21 : f32 to vector<1x128xf32>
          %49 = arith.divf %47, %48 : vector<1x128xf32>
          %c1 = arith.constant 1 : index
          %50 = memref.load %arg1[%c1] : memref<4xf32, #tpu.memory_space<smem>>
          %51 = vector.broadcast %50 : f32 to vector<120x128xf32>
          %52 = arith.mulf %51, %arg7 : vector<120x128xf32>
          %c1_22 = arith.constant 1 : index
          %53 = memref.load %arg1[%c1_22] : memref<4xf32, #tpu.memory_space<smem>>
          %cst_23 = arith.constant 1.000000e+00 : f32
          %54 = arith.subf %cst_23, %53 : f32
          %55 = vector.broadcast %54 : f32 to vector<1x128xf32>
          %56 = arith.mulf %55, %49 : vector<1x128xf32>
          %57 = vector.broadcast %56 : vector<1x128xf32> to vector<120x128xf32>
          %58 = arith.addf %52, %57 : vector<120x128xf32>
          %cst_24 = arith.constant 0.000000e+00 : f32
          %cst_25 = arith.constant 1.000000e+00 : f32
          %59 = vector.broadcast %cst_24 : f32 to vector<120x128xf32>
          %60 = arith.maximumf %59, %58 : vector<120x128xf32>
          %61 = vector.broadcast %cst_25 : f32 to vector<120x128xf32>
          %62 = arith.minimumf %61, %60 : vector<120x128xf32>
          scf.yield %62 : vector<120x128xf32>
        }
        scf.yield %34 : vector<120x128xf32>
      } else {
        %c0_15 = arith.constant 0 : index
        %32 = memref.load %arg1[%c0_15] : memref<4xf32, #tpu.memory_space<smem>>
        %33 = vector.broadcast %32 : f32 to vector<120x128xf32>
        %34 = arith.mulf %33, %arg7 : vector<120x128xf32>
        %cst_16 = arith.constant 0.000000e+00 : f32
        %cst_17 = arith.constant 1.000000e+00 : f32
        %35 = vector.broadcast %cst_16 : f32 to vector<120x128xf32>
        %36 = arith.maximumf %35, %34 : vector<120x128xf32>
        %37 = vector.broadcast %cst_17 : f32 to vector<120x128xf32>
        %38 = arith.minimumf %37, %36 : vector<120x128xf32>
        scf.yield %38 : vector<120x128xf32>
      }
      scf.yield %31 : vector<120x128xf32>
    }
    %c4_i32_1 = arith.constant 4 : i32
    %c4 = arith.constant 4 : index
    %3 = memref.load %arg2[%c4] : memref<6xi32, #tpu.memory_space<smem>>
    %c1_i32_2 = arith.constant 1 : i32
    %4 = arith.cmpi eq, %3, %c1_i32_2 : i32
    %5 = vector.extract_strided_slice %2 {offsets = [0, 0], sizes = [35, 128], strides = [1, 1]} : vector<120x128xf32> to vector<35x128xf32>
    %cst = arith.constant 2.989000e-01 : f32
    %6 = vector.broadcast %cst : f32 to vector<35x128xf32>
    %7 = arith.mulf %6, %5 : vector<35x128xf32>
    %8 = vector.extract_strided_slice %2 {offsets = [40, 0], sizes = [35, 128], strides = [1, 1]} : vector<120x128xf32> to vector<35x128xf32>
    %cst_3 = arith.constant 5.870000e-01 : f32
    %9 = vector.broadcast %cst_3 : f32 to vector<35x128xf32>
    %10 = arith.mulf %9, %8 : vector<35x128xf32>
    %11 = arith.addf %7, %10 : vector<35x128xf32>
    %12 = vector.extract_strided_slice %2 {offsets = [80, 0], sizes = [35, 128], strides = [1, 1]} : vector<120x128xf32> to vector<35x128xf32>
    %cst_4 = arith.constant 1.140000e-01 : f32
    %13 = vector.broadcast %cst_4 : f32 to vector<35x128xf32>
    %14 = arith.mulf %13, %12 : vector<35x128xf32>
    %15 = arith.addf %11, %14 : vector<35x128xf32>
    %cst_5 = arith.constant 0.000000e+00 : f32
    %16 = vector.broadcast %cst_5 : f32 to vector<5x128xf32>
    %17 = tpu.concatenate %15, %16 in 0 : vector<35x128xf32>, vector<5x128xf32> -> vector<40x128xf32>
    %18 = tpu.concatenate %17, %17, %17 in 0 : vector<40x128xf32>, vector<40x128xf32>, vector<40x128xf32> -> vector<120x128xf32>
    %19 = arith.select %4, %18, %2 : vector<120x128xf32>
    %c0_6 = arith.constant 0 : index
    %c0_7 = arith.constant 0 : index
    %20 = vector.load %arg3[%c0_6, %c0_7] : memref<120x120xf32, #tpu.memory_space<vmem>>, vector<120x120xf32>
    %cst_8 = arith.constant dense<0.000000e+00> : vector<120x128xf32>
    %21 = tpu.matmul %20, %19, %cst_8 {dimension_numbers = #tpu.dot_dimension_numbers<[1], [0], [0], [1], [0, 0, 1, 1], [], []>} : vector<120x120xf32>, vector<120x128xf32>, vector<120x128xf32> -> vector<120x128xf32>
    %c5 = arith.constant 5 : index
    %22 = memref.load %arg2[%c5] : memref<6xi32, #tpu.memory_space<smem>>
    %c1_i32_9 = arith.constant 1 : i32
    %23 = arith.cmpi eq, %22, %c1_i32_9 : i32
    %24 = arith.select %23, %21, %19 : vector<120x128xf32>
    %c0_10 = arith.constant 0 : index
    %c0_11 = arith.constant 0 : index
    %25 = vector.load %arg5[%c0_10, %c0_11] : memref<120x128xf32, #tpu.memory_space<vmem>>, vector<120x128xf32>
    tpu.vector_store %arg5[%c0_10, %c0_11], %24 {strides = array<i32>} : memref<120x128xf32, #tpu.memory_space<vmem>>, vector<120x128xf32>,
    return
  }
  func.func @transform_0(%arg0: i32) -> i32 {
    %c0_i32 = arith.constant 0 : i32
    %c0_i32_0 = arith.constant 0 : i32
    return %c0_i32 : i32
  }
  func.func @transform_1(%arg0: i32) -> i32 {
    %c0_i32 = arith.constant 0 : i32
    %c0_i32_0 = arith.constant 0 : i32
    return %c0_i32 : i32
  }
  func.func @transform_2(%arg0: i32) -> (i32, i32) {
    %c0_i32 = arith.constant 0 : i32
    %c0_i32_0 = arith.constant 0 : i32
    %c0_i32_1 = arith.constant 0 : i32
    return %c0_i32, %c0_i32_0 : i32, i32
  }
  func.func @transform_3(%arg0: i32) -> (i32, i32) {
    %c0_i32 = arith.constant 0 : i32
    %c0_i32_0 = arith.constant 0 : i32
    return %c0_i32, %arg0 : i32, i32
  }
  func.func @transform_4(%arg0: i32) -> (i32, i32) {
    %c0_i32 = arith.constant 0 : i32
    %c0_i32_0 = arith.constant 0 : i32
    return %c0_i32, %arg0 : i32, i32
  }
}

</mosaic_0001>

<llo_original>
// kernel: simsiam_transform.3
$region0: #{simsiam_transform.3}
  #allocation0 [shape = 'u32[]', space=smem, size = 0x4, offset = 0x4, fixed_abs, tag = 'smem constant byte address 0x4 - core index']
  #allocation1 [shape = 'u32[72,128]{1,0:T(1,128)}', space=vmem, size = 0x9000, scoped, tag = 'internal scratch']
  %s0 = inlined_call_operand.vmem [shape: f32[4], index: 0, kind: input, shape index: {}]
  %s1 = inlined_call_operand.vmem [shape: s32[6], index: 1, kind: input, shape index: {}]
  %s2 = inlined_call_operand.vmem [shape: f32[120,120], index: 2, kind: input, shape index: {}]
  %s3 = inlined_call_operand.vmem [shape: f32[120,256], index: 3, kind: input, shape index: {}]
  %s4 = inlined_call_operand.vmem [shape: f32[120,256], index: 4, kind: output, shape index: {}]
  %s5 = sld [smem:[#allocation0]]
  $region168: #{simsiam_transform.3} parent=0
    _
  %s7 = ssub.s32 1, %s5
  %s8 = scalar_select 0, %s7, %s5
  $region1: #{simsiam_transform.3} parent=0
    #allocation2 [shape = 'u8[512]{0}', space=smem, size = 0x200, scoped, tag = 'input window, operand 0, single buffered']
    #allocation3 [shape = 's32[2]{0}', space=sflag, size = 0x8, scoped, tag = 'scoped memory for simsiam_transform.3']
    #allocation4 [shape = 'u8[512]{0}', space=smem, size = 0x200, scoped, tag = 'input window, operand 1, single buffered']
    #allocation5 [shape = 's32[1]{0}', space=sflag, size = 0x4, scoped, tag = 'scoped memory for simsiam_transform.3']
    #allocation6 [shape = 'u8[122880]{0}', space=vmem, size = 0x1e000, scoped, tag = 'input window, operand 3']
    #allocation7 [shape = 'u8[122880]{0}', space=vmem, size = 0x1e000, scoped, tag = 'output window, operand 0']
    %9 = vsyncpa [#allocation3], 0
    %10 = vsyncpa [#allocation5], 0
    loop: start=0, step=1, limit=4
    $region2: #{simsiam_transform.3} parent=1 // loop_pre_header
      _
    $region3: #{simsiam_transform.3} parent=1 // loop_header
      %s12 = sphi 0, %s16
      %p13 = scmp.ge.s32.totalorder %s12, 4
      %s20 = sphi 0, %s20
      %s22 = sphi 0, %s20
      %s23 = sphi 0, %s22
      %s37 = sphi 0, %s23
      %s41 = sphi 0, %s41
      %s43 = sphi 0, %s41
      %s44 = sphi 0, %s43
      %s58 = sphi 0, %s44
      %s62 = sphi 0, %s62
      %s64 = sphi 0, %s62
      %s65 = sphi 0, %s64
      %s79 = sphi 0, %s65
      %s85 = sphi 0, %s87
      %s88 = sphi 0, %s85
      %s89 = sphi 0, %s88
      %s105 = sphi 0, %s89
      %s111 = sphi 0, %s113
      %s114 = sphi 0, %s111
      %s115 = sphi 0, %s114
      %s131 = sphi 0, %s115
    $region4: #{simsiam_transform.3} parent=1 // loop_header_branch
      %15 = sbr.rel (%p13) target = $region8
    $region5: #{simsiam_transform.3} parent=1 // loop_body
      %s17 = ssub.s32 %s12, 1
      %s18 = ssub.s32 %s12, 2
      %s19 = sadd.s32 %s12, 1
      %s21 = sadd.s32 %s20, 1
      %p24 = scmp.eq.s32.totalorder %s12, 1
      %p25 = scmp.ne.s32.totalorder %s20, %s22
      %p26 = scmp.eq.s32.totalorder %s12, 0
      %p27 = por %p25, %p26
      %p28 = scmp.ne.s32.totalorder %s20, %s22
      %p29 = scmp.eq.s32.totalorder %s17, 1
      %p30 = por %p28, %p29
      %p31 = scmp.ne.s32.totalorder %s22, %s23
      %p32 = scmp.eq.s32.totalorder %s17, 0
      %p33 = por %p31, %p32
      %p34 = scmp.ne.s32.totalorder %s22, %s23
      %p35 = scmp.eq.s32.totalorder %s18, 1
      %p36 = por %p34, %p35
      %p38 = scmp.ne.s32.totalorder %s23, %s37
      %p39 = scmp.eq.s32.totalorder %s18, 0
      %p40 = por %p38, %p39
      %s42 = sadd.s32 %s41, 1
      %p45 = scmp.eq.s32.totalorder %s12, 1
      %p46 = scmp.ne.s32.totalorder %s41, %s43
      %p47 = scmp.eq.s32.totalorder %s12, 0
      %p48 = por %p46, %p47
      %p49 = scmp.ne.s32.totalorder %s41, %s43
      %p50 = scmp.eq.s32.totalorder %s17, 1
      %p51 = por %p49, %p50
      %p52 = scmp.ne.s32.totalorder %s43, %s44
      %p53 = scmp.eq.s32.totalorder %s17, 0
      %p54 = por %p52, %p53
      %p55 = scmp.ne.s32.totalorder %s43, %s44
      %p56 = scmp.eq.s32.totalorder %s18, 1
      %p57 = por %p55, %p56
      %p59 = scmp.ne.s32.totalorder %s44, %s58
      %p60 = scmp.eq.s32.totalorder %s18, 0
      %p61 = por %p59, %p60
      %s63 = sadd.s32 %s62, 1
      %p66 = scmp.eq.s32.totalorder %s12, 1
      %p67 = scmp.ne.s32.totalorder %s62, %s64
      %p68 = scmp.eq.s32.totalorder %s12, 0
      %p69 = por %p67, %p68
      %p70 = scmp.ne.s32.totalorder %s62, %s64
      %p71 = scmp.eq.s32.totalorder %s17, 1
      %p72 = por %p70, %p71
      %p73 = scmp.ne.s32.totalorder %s64, %s65
      %p74 = scmp.eq.s32.totalorder %s17, 0
      %p75 = por %p73, %p74
      %p76 = scmp.ne.s32.totalorder %s64, %s65
      %p77 = scmp.eq.s32.totalorder %s18, 1
      %p78 = por %p76, %p77
      %p80 = scmp.ne.s32.totalorder %s65, %s79
      %p81 = scmp.eq.s32.totalorder %s18, 0
      %p82 = por %p80, %p81
      %s83 = ssub.s32 %s12, %s19
      %p84 = scmp.eq.s32.totalorder %s83, 0
      %s86 = sadd.s32 %s85, 1
      %s87 = scalar_select %p84, %s85, %s86
      %p90 = pneg %p84
      %p91 = scmp.eq.s32.totalorder %s12, 1
      %p92 = por %p90, %p91
      %p93 = scmp.ne.s32.totalorder %s85, %s88
      %p94 = scmp.eq.s32.totalorder %s12, 0
      %p95 = por %p93, %p94
      %p96 = scmp.ne.s32.totalorder %s85, %s88
      %p97 = scmp.eq.s32.totalorder %s17, 1
      %p98 = por %p96, %p97
      %p99 = scmp.ne.s32.totalorder %s88, %s89
      %p100 = scmp.eq.s32.totalorder %s17, 0
      %p101 = por %p99, %p100
      %p102 = scmp.ne.s32.totalorder %s88, %s89
      %p103 = scmp.eq.s32.totalorder %s18, 1
      %p104 = por %p102, %p103
      %p106 = scmp.ne.s32.totalorder %s89, %s105
      %p107 = scmp.eq.s32.totalorder %s18, 0
      %p108 = por %p106, %p107
      %s109 = ssub.s32 %s12, %s19
      %p110 = scmp.eq.s32.totalorder %s109, 0
      %s112 = sadd.s32 %s111, 1
      %s113 = scalar_select %p110, %s111, %s112
      %p116 = pneg %p110
      %p117 = scmp.eq.s32.totalorder %s12, 1
      %p118 = por %p116, %p117
      %p119 = scmp.ne.s32.totalorder %s111, %s114
      %p120 = scmp.eq.s32.totalorder %s12, 0
      %p121 = por %p119, %p120
      %p122 = scmp.ne.s32.totalorder %s111, %s114
      %p123 = scmp.eq.s32.totalorder %s17, 1
      %p124 = por %p122, %p123
      %p125 = scmp.ne.s32.totalorder %s114, %s115
      %p126 = scmp.eq.s32.totalorder %s17, 0
      %p127 = por %p125, %p126
      %p128 = scmp.ne.s32.totalorder %s114, %s115
      %p129 = scmp.eq.s32.totalorder %s18, 1
      %p130 = por %p128, %p129
      %p132 = scmp.ne.s32.totalorder %s115, %s131
      %p133 = scmp.eq.s32.totalorder %s18, 0
      %p134 = por %p132, %p133
      %p135 = scmp.le.s32.totalorder 1, %s12
      %p136 = scmp.lt.s32.totalorder %s12, 3
      %p137 = pnand %p135, %p136
      %p138 = pneg %p137
      // Predicated region
      $region9: #{simsiam_transform.3} parent=5 // pred_check
        _
      $region10: #{simsiam_transform.3} parent=5 // pred_check_branch
        %140 = sbr.rel (%p137) target = $region12
      $region11: #{simsiam_transform.3} parent=5 // pred_region
        %s141 = ssub.s32 %s12, 1
        // Predicated region
        $region13: #{simsiam_transform.3} parent=11 // pred_check
          %p142 = pneg %p33
        $region14: #{simsiam_transform.3} parent=11 // pred_check_branch
          %144 = sbr.rel (%p142) target = $region16
        $region15: #{simsiam_transform.3} parent=11 // pred_region
          %146 = vsyncadd [#allocation3], 0
          %s148 = sshll.u32 %s0, 4
          %s149 = int_to_ptr.vmem [resolvable:$true] %s148
          %151 = dma.vmem_to_smem %s149, 16, [#allocation2], [#allocation3]
        $region16: #{simsiam_transform.3} parent=11 // pred_fallthru
          _
        // Predicated region
        $region17: #{simsiam_transform.3} parent=11 // pred_check
          %p152 = pneg %p54
        $region18: #{simsiam_transform.3} parent=11 // pred_check_branch
          %154 = sbr.rel (%p152) target = $region20
        $region19: #{simsiam_transform.3} parent=11 // pred_region
          %156 = vsyncadd [#allocation5], 0
          %s158 = sshll.u32 %s1, 4
          %s159 = int_to_ptr.vmem [resolvable:$true] %s158
          %161 = dma.vmem_to_smem %s159, 16, [#allocation4], [#allocation5]
        $region20: #{simsiam_transform.3} parent=11 // pred_fallthru
          _
        // Predicated region
        $region21: #{simsiam_transform.3} parent=11 // pred_check
          %p162 = pneg %p75
        $region22: #{simsiam_transform.3} parent=11 // pred_check_branch
          %164 = sbr.rel (%p162) target = $region24
        $region23: #{simsiam_transform.3} parent=11 // pred_region
          _
        $region24: #{simsiam_transform.3} parent=11 // pred_fallthru
          _
      $region12: #{simsiam_transform.3} parent=5 // pred_fallthru
        _
      %p165 = scmp.lt.s32.totalorder %s12, 2
      // Predicated region
      $region25: #{simsiam_transform.3} parent=5 // pred_check
        %p166 = pneg %p165
      $region26: #{simsiam_transform.3} parent=5 // pred_check_branch
        %168 = sbr.rel (%p166) target = $region28
      $region27: #{simsiam_transform.3} parent=5 // pred_region
        // Predicated region
        $region29: #{simsiam_transform.3} parent=27 // pred_check
          %p169 = pneg %p95
        $region30: #{simsiam_transform.3} parent=27 // pred_check_branch
          %171 = sbr.rel (%p169) target = $region32
        $region31: #{simsiam_transform.3} parent=27 // pred_region
          %s172 = sand.u32 %s85, 1
          %s173 = sand.u32 %s85, 1
          %s174 = smul.addr %s173, 120
          %s175 = scalar_lea.vmem [#allocation6], %s174
          %s176 = smul.addr %s12, 8
          %s177 = scalar_lea.vmem %s3, %s176
          // Predicated region
          $region33: #{simsiam_transform.3} parent=31 // pred_check
            _
          $region34: #{simsiam_transform.3} parent=31 // pred_check_branch
            %179 = sbr.rel (0) target = $region36
          $region35: #{simsiam_transform.3} parent=31 // pred_region
            // Predicated region
            $region37: #{simsiam_transform.3} parent=35 // pred_check
              _
            $region38: #{simsiam_transform.3} parent=35 // pred_check_branch
              %181 = sbr.rel (0) target = $region40
            $region39: #{simsiam_transform.3} parent=35 // pred_region
              // Predicated region
              $region52: #{simsiam_transform.3} parent=39 // pred_check
                _
              $region53: #{simsiam_transform.3} parent=39 // pred_check_branch
                %225 = sbr.rel (0) target = $region55
              $region54: #{simsiam_transform.3} parent=39 // pred_region
                loop: start=0, step=1, limit=1
                $region56: #{simsiam_transform.3} parent=54 // loop_pre_header
                  _
                $region57: #{simsiam_transform.3} parent=54 // loop_header
                  %s227 = sphi 0, %s231
                  %p228 = scmp.ge.s32.totalorder %s227, 1
                  %s232 = sphi %s177, %s177
                  %s233 = sphi %s175, %s175
                $region58: #{simsiam_transform.3} parent=54 // loop_header_branch
                  %230 = sbr.rel (%p228) target = $region62
                $region59: #{simsiam_transform.3} parent=54 // loop_body
                  %v234 = vld [vmem:[%s232] sm:$0xff]
                  %235 = vst [vmem:[%s233] sm:$0xff] %v234
                  %v236 = vld [vmem:[%s232 + $0x10] sm:$0xff]
                  %237 = vst [vmem:[%s233 + $0x8] sm:$0xff] %v236
                  %v238 = vld [vmem:[%s232 + $0x20] sm:$0xff]
                  %239 = vst [vmem:[%s233 + $0x10] sm:$0xff] %v238
                  %v240 = vld [vmem:[%s232 + $0x30] sm:$0xff]
                  %241 = vst [vmem:[%s233 + $0x18] sm:$0xff] %v240
                  %v242 = vld [vmem:[%s232 + $0x40] sm:$0xff]
                  %243 = vst [vmem:[%s233 + $0x20] sm:$0xff] %v242
                  %v244 = vld [vmem:[%s232 + $0x50] sm:$0xff]
                  %245 = vst [vmem:[%s233 + $0x28] sm:$0xff] %v244
                  %v246 = vld [vmem:[%s232 + $0x60] sm:$0xff]
                  %247 = vst [vmem:[%s233 + $0x30] sm:$0xff] %v246
                  %v248 = vld [vmem:[%s232 + $0x70] sm:$0xff]
                  %249 = vst [vmem:[%s233 + $0x38] sm:$0xff] %v248
                  %v250 = vld [vmem:[%s232 + $0x80] sm:$0xff]
                  %251 = vst [vmem:[%s233 + $0x40] sm:$0xff] %v250
                  %v252 = vld [vmem:[%s232 + $0x90] sm:$0xff]
                  %253 = vst [vmem:[%s233 + $0x48] sm:$0xff] %v252
                  %v254 = vld [vmem:[%s232 + $0xa0] sm:$0xff]
                  %255 = vst [vmem:[%s233 + $0x50] sm:$0xff] %v254
                  %v256 = vld [vmem:[%s232 + $0xb0] sm:$0xff]
                  %257 = vst [vmem:[%s233 + $0x58] sm:$0xff] %v256
                  %v258 = vld [vmem:[%s232 + $0xc0] sm:$0xff]
                  %259 = vst [vmem:[%s233 + $0x60] sm:$0xff] %v258
                  %v260 = vld [vmem:[%s232 + $0xd0] sm:$0xff]
                  %261 = vst [vmem:[%s233 + $0x68] sm:$0xff] %v260
                  %v262 = vld [vmem:[%s232 + $0xe0] sm:$0xff]
                  %263 = vst [vmem:[%s233 + $0x70] sm:$0xff] %v262
                $region60: #{simsiam_transform.3} parent=54 // loop_footer
                  %s231 = sadd.s32 1, %s227
                $region61: #{simsiam_transform.3} parent=54 // loop_footer_branch
                  %226 = sbr.rel target = $region57
                $region62: #{simsiam_transform.3} parent=54 // loop_exit
                  _
              $region55: #{simsiam_transform.3} parent=39 // pred_fallthru
                _
              // Predicated region
              $region63: #{simsiam_transform.3} parent=39 // pred_check
                _
              $region64: #{simsiam_transform.3} parent=39 // pred_check_branch
                %265 = sbr.rel target = $region66
              $region65: #{simsiam_transform.3} parent=39 // pred_region
                _
              $region66: #{simsiam_transform.3} parent=39 // pred_fallthru
                _
            $region40: #{simsiam_transform.3} parent=35 // pred_fallthru
              _
            // Predicated region
            $region41: #{simsiam_transform.3} parent=35 // pred_check
              _
            $region42: #{simsiam_transform.3} parent=35 // pred_check_branch
              %183 = sbr.rel target = $region44
            $region43: #{simsiam_transform.3} parent=35 // pred_region
              %s185 = ssub.s32 256, 1
              loop: start=0, step=1, limit=1
              $region45: #{simsiam_transform.3} parent=43 // loop_pre_header
                _
              $region46: #{simsiam_transform.3} parent=43 // loop_header
                %s187 = sphi 0, %s191
                %p188 = scmp.ge.s32.totalorder %s187, 1
                %s192 = sphi %s177, %s177
                %s193 = sphi %s175, %s175
              $region47: #{simsiam_transform.3} parent=43 // loop_header_branch
                %190 = sbr.rel (%p188) target = $region51
              $region48: #{simsiam_transform.3} parent=43 // loop_body
                %v194 = vld [vmem:[%s192] sm:%s185]
                %195 = vst [vmem:[%s193] sm:%s185] %v194
                %v196 = vld [vmem:[%s192 + $0x10] sm:%s185]
                %197 = vst [vmem:[%s193 + $0x8] sm:%s185] %v196
                %v198 = vld [vmem:[%s192 + $0x20] sm:%s185]
                %199 = vst [vmem:[%s193 + $0x10] sm:%s185] %v198
                %v200 = vld [vmem:[%s192 + $0x30] sm:%s185]
                %201 = vst [vmem:[%s193 + $0x18] sm:%s185] %v200
                %v202 = vld [vmem:[%s192 + $0x40] sm:%s185]
                %203 = vst [vmem:[%s193 + $0x20] sm:%s185] %v202
                %v204 = vld [vmem:[%s192 + $0x50] sm:%s185]
                %205 = vst [vmem:[%s193 + $0x28] sm:%s185] %v204
                %v206 = vld [vmem:[%s192 + $0x60] sm:%s185]
                %207 = vst [vmem:[%s193 + $0x30] sm:%s185] %v206
                %v208 = vld [vmem:[%s192 + $0x70] sm:%s185]
                %209 = vst [vmem:[%s193 + $0x38] sm:%s185] %v208
                %v210 = vld [vmem:[%s192 + $0x80] sm:%s185]
                %211 = vst [vmem:[%s193 + $0x40] sm:%s185] %v210
                %v212 = vld [vmem:[%s192 + $0x90] sm:%s185]
                %213 = vst [vmem:[%s193 + $0x48] sm:%s185] %v212
                %v214 = vld [vmem:[%s192 + $0xa0] sm:%s185]
                %215 = vst [vmem:[%s193 + $0x50] sm:%s185] %v214
                %v216 = vld [vmem:[%s192 + $0xb0] sm:%s185]
                %217 = vst [vmem:[%s193 + $0x58] sm:%s185] %v216
                %v218 = vld [vmem:[%s192 + $0xc0] sm:%s185]
                %219 = vst [vmem:[%s193 + $0x60] sm:%s185] %v218
                %v220 = vld [vmem:[%s192 + $0xd0] sm:%s185]
                %221 = vst [vmem:[%s193 + $0x68] sm:%s185] %v220
                %v222 = vld [vmem:[%s192 + $0xe0] sm:%s185]
                %223 = vst [vmem:[%s193 + $0x70] sm:%s185] %v222
              $region49: #{simsiam_transform.3} parent=43 // loop_footer
                %s191 = sadd.s32 1, %s187
              $region50: #{simsiam_transform.3} parent=43 // loop_footer_branch
                %186 = sbr.rel target = $region46
              $region51: #{simsiam_transform.3} parent=43 // loop_exit
                _
            $region44: #{simsiam_transform.3} parent=35 // pred_fallthru
              _
          $region36: #{simsiam_transform.3} parent=31 // pred_fallthru
            _
          %266 = vnop
        $region32: #{simsiam_transform.3} parent=27 // pred_fallthru
          _
      $region28: #{simsiam_transform.3} parent=5 // pred_fallthru
        _
      %p267 = scmp.le.s32.totalorder 1, %s12
      %p268 = scmp.lt.s32.totalorder %s12, 3
      %p269 = pnand %p267, %p268
      %p270 = pneg %p269
      // Predicated region
      $region67: #{simsiam_transform.3} parent=5 // pred_check
        _
      $region68: #{simsiam_transform.3} parent=5 // pred_check_branch
        %272 = sbr.rel (%p269) target = $region70
      $region69: #{simsiam_transform.3} parent=5 // pred_region
        %s273 = ssub.s32 %s12, 1
        // Predicated region
        $region71: #{simsiam_transform.3} parent=69 // pred_check
          %p274 = pneg %p33
        $region72: #{simsiam_transform.3} parent=69 // pred_check_branch
          %276 = sbr.rel (%p274) target = $region74
        $region73: #{simsiam_transform.3} parent=69 // pred_region
          %278 = dma.done [#allocation3], 16
        $region74: #{simsiam_transform.3} parent=69 // pred_fallthru
          _
        // Predicated region
        $region75: #{simsiam_transform.3} parent=69 // pred_check
          %p279 = pneg %p54
        $region76: #{simsiam_transform.3} parent=69 // pred_check_branch
          %281 = sbr.rel (%p279) target = $region78
        $region77: #{simsiam_transform.3} parent=69 // pred_region
          %283 = dma.done [#allocation5], 16
        $region78: #{simsiam_transform.3} parent=69 // pred_fallthru
          _
        %s284 = sand.u32 %s88, 1
        %s285 = sand.u32 %s88, 1
        %s286 = smul.addr %s285, 120
        %s287 = scalar_lea.vmem [#allocation6], %s286
        // Predicated region
        $region79: #{simsiam_transform.3} parent=69 // pred_check
          %p288 = pneg %p101
        $region80: #{simsiam_transform.3} parent=69 // pred_check_branch
          %290 = sbr.rel (%p288) target = $region82
        $region81: #{simsiam_transform.3} parent=69 // pred_region
          _
        $region82: #{simsiam_transform.3} parent=69 // pred_fallthru
          _
        %291 = sfence
        %p292 = pneg %p33
        %p293 = pneg %p30
        %p294 = pneg %p54
        %p295 = pneg %p51
        %p296 = pneg %p75
        %p297 = pneg %p72
        %s298 = sand.u32 %s88, 1
        %s299 = sand.u32 %s88, 1
        %s300 = smul.addr %s299, 120
        %s301 = scalar_lea.vmem [#allocation6], %s300
        %p302 = pneg %p101
        %p303 = pneg %p98
        %p304 = pneg %p127
        %p305 = pneg %p124
        %s306 = sand.u32 %s114, 1
        %s307 = sand.u32 %s114, 1
        %s308 = smul.addr %s307, 120
        %s309 = scalar_lea.vmem [#allocation7], %s308
        %v310 = vld [vmem:[%s287] sm:$0xff]
        %v311 = vld [vmem:[%s287 + $0x8] sm:$0xff]
        %v312 = vld [vmem:[%s287 + $0x10] sm:$0xff]
        %v313 = vld [vmem:[%s287 + $0x18] sm:$0xff]
        %v314 = vld [vmem:[%s287 + $0x20] sm:$0xff]
        %v315 = vld [vmem:[%s287 + $0x28] sm:$0xff]
        %v316 = vld [vmem:[%s287 + $0x30] sm:$0xff]
        %v317 = vld [vmem:[%s287 + $0x38] sm:$0xff]
        %v318 = vld [vmem:[%s287 + $0x40] sm:$0xff]
        %v319 = vld [vmem:[%s287 + $0x48] sm:$0xff]
        %v320 = vld [vmem:[%s287 + $0x50] sm:$0xff]
        %v321 = vld [vmem:[%s287 + $0x58] sm:$0xff]
        %v322 = vld [vmem:[%s287 + $0x60] sm:$0xff]
        %v323 = vld [vmem:[%s287 + $0x68] sm:$0xff]
        %v324 = vld [vmem:[%s287 + $0x70] sm:$0xff]
        loop: start=0, step=1, limit=4
        $region83: #{simsiam_transform.3} parent=69 // loop_pre_header
          _
        $region84: #{simsiam_transform.3} parent=69 // loop_header
          %s326 = sphi 0, %s330
          %p327 = scmp.ge.s32.totalorder %s326, 4
          %v331 = vphi %v310, %v1126
          %v332 = vphi %v311, %v1127
          %v333 = vphi %v312, %v1128
          %v334 = vphi %v313, %v1129
          %v335 = vphi %v314, %v1130
          %v336 = vphi %v315, %v1131
          %v337 = vphi %v316, %v1132
          %v338 = vphi %v317, %v1133
          %v339 = vphi %v318, %v1134
          %v340 = vphi %v319, %v1135
          %v341 = vphi %v320, %v1136
          %v342 = vphi %v321, %v1137
          %v343 = vphi %v322, %v1138
          %v344 = vphi %v323, %v1139
          %v345 = vphi %v324, %v1140
        $region85: #{simsiam_transform.3} parent=69 // loop_header_branch
          %329 = sbr.rel (%p327) target = $region89
        $region86: #{simsiam_transform.3} parent=69 // loop_body
          %s346 = sld [smem:[#allocation4 + %s326]]
          %p347 = scmp.gt.s32.totalorder %s346, 0
          %s348 = scalar_select %p347, %s346, 0
          %p349 = scmp.lt.s32.totalorder %s348, 4
          %s350 = scalar_select %p349, %s348, 4
          %p351 = scmp.ne.s32.totalorder %s350, 0
          // Predicated region
          $region90: #{simsiam_transform.3} parent=86 // pred_check
            %p352 = pneg %p351
          $region91: #{simsiam_transform.3} parent=86 // pred_check_branch
            %354 = sbr.rel (%p352) target = $region93
          $region92: #{simsiam_transform.3} parent=86 // pred_region
            %s355 = ssub.s32 %s350, 1
            %p356 = scmp.ne.s32.totalorder %s355, 0
            // Predicated region
            $region94: #{simsiam_transform.3} parent=92 // pred_check
              %p357 = pneg %p356
            $region95: #{simsiam_transform.3} parent=92 // pred_check_branch
              %359 = sbr.rel (%p357) target = $region97
            $region96: #{simsiam_transform.3} parent=92 // pred_region
              %s360 = ssub.s32 %s350, 2
              %p361 = scmp.ne.s32.totalorder %s360, 0
              // Predicated region
              $region98: #{simsiam_transform.3} parent=96 // pred_check
                %p362 = pneg %p361
              $region99: #{simsiam_transform.3} parent=96 // pred_check_branch
                %364 = sbr.rel (%p362) target = $region101
              $region100: #{simsiam_transform.3} parent=96 // pred_region
                %s365 = ssub.s32 %s350, 3
                %p366 = scmp.ne.s32.totalorder %s365, 0
                // Predicated region
                $region102: #{simsiam_transform.3} parent=100 // pred_check
                  %p367 = pneg %p366
                $region103: #{simsiam_transform.3} parent=100 // pred_check_branch
                  %369 = sbr.rel (%p367) target = $region105
                $region104: #{simsiam_transform.3} parent=100 // pred_region
                  _
                $region105: #{simsiam_transform.3} parent=100 // pred_fallthru
                  _
                %p370 = pneg %p366
                // Predicated region
                $region106: #{simsiam_transform.3} parent=100 // pred_check
                  _
                $region107: #{simsiam_transform.3} parent=100 // pred_check_branch
                  %372 = sbr.rel (%p366) target = $region109
                $region108: #{simsiam_transform.3} parent=100 // pred_region
                  %s373 = sld [smem:[#allocation2 + $0x3]]
                  %v374 = vmax.f32 %v331, %v336
                  %v375 = vmax.f32 %v332, %v337
                  %v376 = vmax.f32 %v333, %v338
                  %v377 = vmax.f32 %v334, %v339
                  %v378 = vmax.f32 %v335, %v340
                  %v379 = vmax.f32 %v374, %v341
                  %v380 = vmax.f32 %v375, %v342
                  %v381 = vmax.f32 %v376, %v343
                  %v382 = vmax.f32 %v377, %v344
                  %v383 = vmax.f32 %v378, %v345
                  %v384 = vmin.f32 %v331, %v336
                  %v385 = vmin.f32 %v332, %v337
                  %v386 = vmin.f32 %v333, %v338
                  %v387 = vmin.f32 %v334, %v339
                  %v388 = vmin.f32 %v335, %v340
                  %v389 = vmin.f32 %v384, %v341
                  %v390 = vmin.f32 %v385, %v342
                  %v391 = vmin.f32 %v386, %v343
                  %v392 = vmin.f32 %v387, %v344
                  %v393 = vmin.f32 %v388, %v345
                  %vm394 = vcmp.eq.f32.partialorder %v379, %v389
                  %vm395 = vcmp.eq.f32.partialorder %v380, %v390
                  %vm396 = vcmp.eq.f32.partialorder %v381, %v391
                  %vm397 = vcmp.eq.f32.partialorder %v382, %v392
                  %vm398 = vcmp.eq.f32.partialorder %v383, %v393
                  %v399 = vsub.f32 %v379, %v389
                  %v400 = vsub.f32 %v380, %v390
                  %v401 = vsub.f32 %v381, %v391
                  %v402 = vsub.f32 %v382, %v392
                  %v403 = vsub.f32 %v383, %v393
                  %v404 = vsel %vm394, 1.0, %v379
                  %v405 = vsel %vm395, 1.0, %v380
                  %v406 = vsel %vm396, 1.0, %v381
                  %v407 = vsel %vm397, 1.0, %v382
                  %v408 = vsel %vm398, 1.0, %v383
                  %v409 = vrcp.pop %v404
                  %v410 = vrcp.pop %v405
                  %v411 = vrcp.pop %v406
                  %v412 = vrcp.pop %v407
                  %v413 = vrcp.pop %v408
                  %v414 = vmul.f32 %v399, %v409
                  %v415 = vmul.f32 %v400, %v410
                  %v416 = vmul.f32 %v401, %v411
                  %v417 = vmul.f32 %v402, %v412
                  %v418 = vmul.f32 %v403, %v413
                  %v419 = vsel %vm394, 1.0, %v399
                  %v420 = vsel %vm395, 1.0, %v400
                  %v421 = vsel %vm396, 1.0, %v401
                  %v422 = vsel %vm397, 1.0, %v402
                  %v423 = vsel %vm398, 1.0, %v403
                  %v424 = vrcp.pop %v419
                  %v425 = vrcp.pop %v420
                  %v426 = vrcp.pop %v421
                  %v427 = vrcp.pop %v422
                  %v428 = vrcp.pop %v423
                  %v429 = vsub.f32 %v379, %v331
                  %v430 = vsub.f32 %v380, %v332
                  %v431 = vsub.f32 %v381, %v333
                  %v432 = vsub.f32 %v382, %v334
                  %v433 = vsub.f32 %v383, %v335
                  %v434 = vmul.f32 %v429, %v424
                  %v435 = vmul.f32 %v430, %v425
                  %v436 = vmul.f32 %v431, %v426
                  %v437 = vmul.f32 %v432, %v427
                  %v438 = vmul.f32 %v433, %v428
                  %v439 = vsub.f32 %v379, %v336
                  %v440 = vsub.f32 %v380, %v337
                  %v441 = vsub.f32 %v381, %v338
                  %v442 = vsub.f32 %v382, %v339
                  %v443 = vsub.f32 %v383, %v340
                  %v444 = vmul.f32 %v439, %v424
                  %v445 = vmul.f32 %v440, %v425
                  %v446 = vmul.f32 %v441, %v426
                  %v447 = vmul.f32 %v442, %v427
                  %v448 = vmul.f32 %v443, %v428
                  %v449 = vsub.f32 %v379, %v341
                  %v450 = vsub.f32 %v380, %v342
                  %v451 = vsub.f32 %v381, %v343
                  %v452 = vsub.f32 %v382, %v344
                  %v453 = vsub.f32 %v383, %v345
                  %v454 = vmul.f32 %v449, %v424
                  %v455 = vmul.f32 %v450, %v425
                  %v456 = vmul.f32 %v451, %v426
                  %v457 = vmul.f32 %v452, %v427
                  %v458 = vmul.f32 %v453, %v428
                  %vm459 = vcmp.eq.f32.partialorder %v379, %v331
                  %vm460 = vcmp.eq.f32.partialorder %v380, %v332
                  %vm461 = vcmp.eq.f32.partialorder %v381, %v333
                  %vm462 = vcmp.eq.f32.partialorder %v382, %v334
                  %vm463 = vcmp.eq.f32.partialorder %v383, %v335
                  %v464 = vsel %vm459, 1, 0
                  %v465 = vsel %vm460, 1, 0
                  %v466 = vsel %vm461, 1, 0
                  %v467 = vsel %vm462, 1, 0
                  %v468 = vsel %vm463, 1, 0
                  %v469 = vcvt.s32.f32 %v464
                  %v470 = vcvt.s32.f32 %v465
                  %v471 = vcvt.s32.f32 %v466
                  %v472 = vcvt.s32.f32 %v467
                  %v473 = vcvt.s32.f32 %v468
                  %v474 = vsub.f32 %v454, %v444
                  %v475 = vsub.f32 %v455, %v445
                  %v476 = vsub.f32 %v456, %v446
                  %v477 = vsub.f32 %v457, %v447
                  %v478 = vsub.f32 %v458, %v448
                  %v479 = vmul.f32 %v469, %v474
                  %v480 = vmul.f32 %v470, %v475
                  %v481 = vmul.f32 %v471, %v476
                  %v482 = vmul.f32 %v472, %v477
                  %v483 = vmul.f32 %v473, %v478
                  %vm484 = vcmp.eq.f32.partialorder %v379, %v336
                  %vm485 = vcmp.eq.f32.partialorder %v380, %v337
                  %vm486 = vcmp.eq.f32.partialorder %v381, %v338
                  %vm487 = vcmp.eq.f32.partialorder %v382, %v339
                  %vm488 = vcmp.eq.f32.partialorder %v383, %v340
                  %vm489 = vcmp.ne.f32.partialorder %v379, %v331
                  %vm490 = vcmp.ne.f32.partialorder %v380, %v332
                  %vm491 = vcmp.ne.f32.partialorder %v381, %v333
                  %vm492 = vcmp.ne.f32.partialorder %v382, %v334
                  %vm493 = vcmp.ne.f32.partialorder %v383, %v335
                  %vm494 = vmand %vm484, %vm489
                  %vm495 = vmand %vm485, %vm490
                  %vm496 = vmand %vm486, %vm491
                  %vm497 = vmand %vm487, %vm492
                  %vm498 = vmand %vm488, %vm493
                  %v499 = vsel %vm494, 1, 0
                  %v500 = vsel %vm495, 1, 0
                  %v501 = vsel %vm496, 1, 0
                  %v502 = vsel %vm497, 1, 0
                  %v503 = vsel %vm498, 1, 0
                  %v504 = vcvt.s32.f32 %v499
                  %v505 = vcvt.s32.f32 %v500
                  %v506 = vcvt.s32.f32 %v501
                  %v507 = vcvt.s32.f32 %v502
                  %v508 = vcvt.s32.f32 %v503
                  %v509 = vadd.f32 %v434, 2.0
                  %v510 = vadd.f32 %v435, 2.0
                  %v511 = vadd.f32 %v436, 2.0
                  %v512 = vadd.f32 %v437, 2.0
                  %v513 = vadd.f32 %v438, 2.0
                  %v514 = vsub.f32 %v509, %v454
                  %v515 = vsub.f32 %v510, %v455
                  %v516 = vsub.f32 %v511, %v456
                  %v517 = vsub.f32 %v512, %v457
                  %v518 = vsub.f32 %v513, %v458
                  %v519 = vmul.f32 %v504, %v514
                  %v520 = vmul.f32 %v505, %v515
                  %v521 = vmul.f32 %v506, %v516
                  %v522 = vmul.f32 %v507, %v517
                  %v523 = vmul.f32 %v508, %v518
                  %vm524 = vcmp.ne.f32.partialorder %v379, %v336
                  %vm525 = vcmp.ne.f32.partialorder %v380, %v337
                  %vm526 = vcmp.ne.f32.partialorder %v381, %v338
                  %vm527 = vcmp.ne.f32.partialorder %v382, %v339
                  %vm528 = vcmp.ne.f32.partialorder %v383, %v340
                  %vm529 = vmand %vm524, %vm489
                  %vm530 = vmand %vm525, %vm490
                  %vm531 = vmand %vm526, %vm491
                  %vm532 = vmand %vm527, %vm492
                  %vm533 = vmand %vm528, %vm493
                  %v534 = vsel %vm529, 1, 0
                  %v535 = vsel %vm530, 1, 0
                  %v536 = vsel %vm531, 1, 0
                  %v537 = vsel %vm532, 1, 0
                  %v538 = vsel %vm533, 1, 0
                  %v539 = vcvt.s32.f32 %v534
                  %v540 = vcvt.s32.f32 %v535
                  %v541 = vcvt.s32.f32 %v536
                  %v542 = vcvt.s32.f32 %v537
                  %v543 = vcvt.s32.f32 %v538
                  %v544 = vadd.f32 %v444, 4.0
                  %v545 = vadd.f32 %v445, 4.0
                  %v546 = vadd.f32 %v446, 4.0
                  %v547 = vadd.f32 %v447, 4.0
                  %v548 = vadd.f32 %v448, 4.0
                  %v549 = vsub.f32 %v544, %v434
                  %v550 = vsub.f32 %v545, %v435
                  %v551 = vsub.f32 %v546, %v436
                  %v552 = vsub.f32 %v547, %v437
                  %v553 = vsub.f32 %v548, %v438
                  %v554 = vmul.f32 %v539, %v549
                  %v555 = vmul.f32 %v540, %v550
                  %v556 = vmul.f32 %v541, %v551
                  %v557 = vmul.f32 %v542, %v552
                  %v558 = vmul.f32 %v543, %v553
                  %v559 = vadd.f32 %v479, %v519
                  %v560 = vadd.f32 %v480, %v520
                  %v561 = vadd.f32 %v481, %v521
                  %v562 = vadd.f32 %v482, %v522
                  %v563 = vadd.f32 %v483, %v523
                  %v564 = vadd.f32 %v559, %v554
                  %v565 = vadd.f32 %v560, %v555
                  %v566 = vadd.f32 %v561, %v556
                  %v567 = vadd.f32 %v562, %v557
                  %v568 = vadd.f32 %v563, %v558
                  %v569 = vmul.f32 %v564, 0.16666667
                  %v570 = vmul.f32 %v565, 0.16666667
                  %v571 = vmul.f32 %v566, 0.16666667
                  %v572 = vmul.f32 %v567, 0.16666667
                  %v573 = vmul.f32 %v568, 0.16666667
                  %v574 = vadd.f32 %v569, 1.0
                  %v575 = vadd.f32 %v570, 1.0
                  %v576 = vadd.f32 %v571, 1.0
                  %v577 = vadd.f32 %v572, 1.0
                  %v578 = vadd.f32 %v573, 1.0
                  %v579 = vfloor.f32 %v574
                  %v580 = vfloor.f32 %v575
                  %v581 = vfloor.f32 %v576
                  %v582 = vfloor.f32 %v577
                  %v583 = vfloor.f32 %v578
                  %v584 = vsub.f32 %v574, %v579
                  %v585 = vsub.f32 %v575, %v580
                  %v586 = vsub.f32 %v576, %v581
                  %v587 = vsub.f32 %v577, %v582
                  %v588 = vsub.f32 %v578, %v583
                  %v589 = vstv %s373
                  %v590 = vadd.f32 %v584, %v589
                  %v591 = vadd.f32 %v585, %v589
                  %v592 = vadd.f32 %v586, %v589
                  %v593 = vadd.f32 %v587, %v589
                  %v594 = vadd.f32 %v588, %v589
                  %v595 = vfloor.f32 %v590
                  %v596 = vfloor.f32 %v591
                  %v597 = vfloor.f32 %v592
                  %v598 = vfloor.f32 %v593
                  %v599 = vfloor.f32 %v594
                  %v600 = vsub.f32 %v590, %v595
                  %v601 = vsub.f32 %v591, %v596
                  %v602 = vsub.f32 %v592, %v597
                  %v603 = vsub.f32 %v593, %v598
                  %v604 = vsub.f32 %v594, %v599
                  %v605 = vmul.f32 %v600, 6.0
                  %v606 = vmul.f32 %v601, 6.0
                  %v607 = vmul.f32 %v602, 6.0
                  %v608 = vmul.f32 %v603, 6.0
                  %v609 = vmul.f32 %v604, 6.0
                  %v610 = vfloor.f32 %v605
                  %v611 = vfloor.f32 %v606
                  %v612 = vfloor.f32 %v607
                  %v613 = vfloor.f32 %v608
                  %v614 = vfloor.f32 %v609
                  %v615 = vmax.f32 %v610, 0.0
                  %v616 = vmax.f32 %v611, 0.0
                  %v617 = vmax.f32 %v612, 0.0
                  %v618 = vmax.f32 %v613, 0.0
                  %v619 = vmax.f32 %v614, 0.0
                  %v620 = vmin.f32 %v615, 5.0
                  %v621 = vmin.f32 %v616, 5.0
                  %v622 = vmin.f32 %v617, 5.0
                  %v623 = vmin.f32 %v618, 5.0
                  %v624 = vmin.f32 %v619, 5.0
                  %v625 = vsub.f32 %v605, %v610
                  %v626 = vsub.f32 %v606, %v611
                  %v627 = vsub.f32 %v607, %v612
                  %v628 = vsub.f32 %v608, %v613
                  %v629 = vsub.f32 %v609, %v614
                  %v630 = vsub.f32 1.0, %v414
                  %v631 = vsub.f32 1.0, %v415
                  %v632 = vsub.f32 1.0, %v416
                  %v633 = vsub.f32 1.0, %v417
                  %v634 = vsub.f32 1.0, %v418
                  %v635 = vmul.f32 %v379, %v630
                  %v636 = vmul.f32 %v380, %v631
                  %v637 = vmul.f32 %v381, %v632
                  %v638 = vmul.f32 %v382, %v633
                  %v639 = vmul.f32 %v383, %v634
                  %v640 = vmul.f32 %v414, %v625
                  %v641 = vmul.f32 %v415, %v626
                  %v642 = vmul.f32 %v416, %v627
                  %v643 = vmul.f32 %v417, %v628
                  %v644 = vmul.f32 %v418, %v629
                  %v645 = vsub.f32 1.0, %v640
                  %v646 = vsub.f32 1.0, %v641
                  %v647 = vsub.f32 1.0, %v642
                  %v648 = vsub.f32 1.0, %v643
                  %v649 = vsub.f32 1.0, %v644
                  %v650 = vmul.f32 %v379, %v645
                  %v651 = vmul.f32 %v380, %v646
                  %v652 = vmul.f32 %v381, %v647
                  %v653 = vmul.f32 %v382, %v648
                  %v654 = vmul.f32 %v383, %v649
                  %v655 = vsub.f32 1.0, %v625
                  %v656 = vsub.f32 1.0, %v626
                  %v657 = vsub.f32 1.0, %v627
                  %v658 = vsub.f32 1.0, %v628
                  %v659 = vsub.f32 1.0, %v629
                  %v660 = vmul.f32 %v414, %v655
                  %v661 = vmul.f32 %v415, %v656
                  %v662 = vmul.f32 %v416, %v657
                  %v663 = vmul.f32 %v417, %v658
                  %v664 = vmul.f32 %v418, %v659
                  %v665 = vsub.f32 1.0, %v660
                  %v666 = vsub.f32 1.0, %v661
                  %v667 = vsub.f32 1.0, %v662
                  %v668 = vsub.f32 1.0, %v663
                  %v669 = vsub.f32 1.0, %v664
                  %v670 = vmul.f32 %v379, %v665
                  %v671 = vmul.f32 %v380, %v666
                  %v672 = vmul.f32 %v381, %v667
                  %v673 = vmul.f32 %v382, %v668
                  %v674 = vmul.f32 %v383, %v669
                  %vm675 = vcmp.eq.f32.partialorder %v620, 0.0
                  %vm676 = vcmp.eq.f32.partialorder %v621, 0.0
                  %vm677 = vcmp.eq.f32.partialorder %v622, 0.0
                  %vm678 = vcmp.eq.f32.partialorder %v623, 0.0
                  %vm679 = vcmp.eq.f32.partialorder %v624, 0.0
                  %vm680 = vcmp.eq.f32.partialorder %v620, 1.0
                  %vm681 = vcmp.eq.f32.partialorder %v621, 1.0
                  %vm682 = vcmp.eq.f32.partialorder %v622, 1.0
                  %vm683 = vcmp.eq.f32.partialorder %v623, 1.0
                  %vm684 = vcmp.eq.f32.partialorder %v624, 1.0
                  %vm685 = vcmp.eq.f32.partialorder %v620, 2.0
                  %vm686 = vcmp.eq.f32.partialorder %v621, 2.0
                  %vm687 = vcmp.eq.f32.partialorder %v622, 2.0
                  %vm688 = vcmp.eq.f32.partialorder %v623, 2.0
                  %vm689 = vcmp.eq.f32.partialorder %v624, 2.0
                  %vm690 = vcmp.eq.f32.partialorder %v620, 3.0
                  %vm691 = vcmp.eq.f32.partialorder %v621, 3.0
                  %vm692 = vcmp.eq.f32.partialorder %v622, 3.0
                  %vm693 = vcmp.eq.f32.partialorder %v623, 3.0
                  %vm694 = vcmp.eq.f32.partialorder %v624, 3.0
                  %vm695 = vcmp.eq.f32.partialorder %v620, 4.0
                  %vm696 = vcmp.eq.f32.partialorder %v621, 4.0
                  %vm697 = vcmp.eq.f32.partialorder %v622, 4.0
                  %vm698 = vcmp.eq.f32.partialorder %v623, 4.0
                  %vm699 = vcmp.eq.f32.partialorder %v624, 4.0
                  %v700 = vsel %vm695, %v670, %v379
                  %v701 = vsel %vm696, %v671, %v380
                  %v702 = vsel %vm697, %v672, %v381
                  %v703 = vsel %vm698, %v673, %v382
                  %v704 = vsel %vm699, %v674, %v383
                  %v705 = vsel %vm690, %v635, %v700
                  %v706 = vsel %vm691, %v636, %v701
                  %v707 = vsel %vm692, %v637, %v702
                  %v708 = vsel %vm693, %v638, %v703
                  %v709 = vsel %vm694, %v639, %v704
                  %v710 = vsel %vm685, %v635, %v705
                  %v711 = vsel %vm686, %v636, %v706
                  %v712 = vsel %vm687, %v637, %v707
                  %v713 = vsel %vm688, %v638, %v708
                  %v714 = vsel %vm689, %v639, %v709
                  %v715 = vsel %vm680, %v650, %v710
                  %v716 = vsel %vm681, %v651, %v711
                  %v717 = vsel %vm682, %v652, %v712
                  %v718 = vsel %vm683, %v653, %v713
                  %v719 = vsel %vm684, %v654, %v714
                  %v720 = vsel %vm675, %v379, %v715
                  %v721 = vsel %vm676, %v380, %v716
                  %v722 = vsel %vm677, %v381, %v717
                  %v723 = vsel %vm678, %v382, %v718
                  %v724 = vsel %vm679, %v383, %v719
                  %v725 = vsel %vm690, %v650, %v635
                  %v726 = vsel %vm691, %v651, %v636
                  %v727 = vsel %vm692, %v652, %v637
                  %v728 = vsel %vm693, %v653, %v638
                  %v729 = vsel %vm694, %v654, %v639
                  %v730 = vsel %vm685, %v379, %v725
                  %v731 = vsel %vm686, %v380, %v726
                  %v732 = vsel %vm687, %v381, %v727
                  %v733 = vsel %vm688, %v382, %v728
                  %v734 = vsel %vm689, %v383, %v729
                  %v735 = vsel %vm680, %v379, %v730
                  %v736 = vsel %vm681, %v380, %v731
                  %v737 = vsel %vm682, %v381, %v732
                  %v738 = vsel %vm683, %v382, %v733
                  %v739 = vsel %vm684, %v383, %v734
                  %v740 = vsel %vm675, %v670, %v735
                  %v741 = vsel %vm676, %v671, %v736
                  %v742 = vsel %vm677, %v672, %v737
                  %v743 = vsel %vm678, %v673, %v738
                  %v744 = vsel %vm679, %v674, %v739
                  %v745 = vsel %vm695, %v379, %v650
                  %v746 = vsel %vm696, %v380, %v651
                  %v747 = vsel %vm697, %v381, %v652
                  %v748 = vsel %vm698, %v382, %v653
                  %v749 = vsel %vm699, %v383, %v654
                  %v750 = vsel %vm690, %v379, %v745
                  %v751 = vsel %vm691, %v380, %v746
                  %v752 = vsel %vm692, %v381, %v747
                  %v753 = vsel %vm693, %v382, %v748
                  %v754 = vsel %vm694, %v383, %v749
                  %v755 = vsel %vm685, %v670, %v750
                  %v756 = vsel %vm686, %v671, %v751
                  %v757 = vsel %vm687, %v672, %v752
                  %v758 = vsel %vm688, %v673, %v753
                  %v759 = vsel %vm689, %v674, %v754
                  %v760 = vsel %vm680, %v635, %v755
                  %v761 = vsel %vm681, %v636, %v756
                  %v762 = vsel %vm682, %v637, %v757
                  %v763 = vsel %vm683, %v638, %v758
                  %v764 = vsel %vm684, %v639, %v759
                  %v765 = vsel %vm675, %v635, %v760
                  %v766 = vsel %vm676, %v636, %v761
                  %v767 = vsel %vm677, %v637, %v762
                  %v768 = vsel %vm678, %v638, %v763
                  %v769 = vsel %vm679, %v639, %v764
                  %vm770 = vcmask 1042432
                  %v771 = vsel %vm770, %v724, 0.0
                  %v772 = vsel %vm770, %v744, 0.0
                  %v773 = vsel %vm770, %v769, 0.0
                $region109: #{simsiam_transform.3} parent=100 // pred_fallthru
                  %v774 = vphi %v331, %v720
                  %v775 = vphi %v332, %v721
                  %v776 = vphi %v333, %v722
                  %v777 = vphi %v334, %v723
                  %v778 = vphi %v335, %v771
                  %v779 = vphi %v336, %v740
                  %v780 = vphi %v337, %v741
                  %v781 = vphi %v338, %v742
                  %v782 = vphi %v339, %v743
                  %v783 = vphi %v340, %v772
                  %v784 = vphi %v341, %v765
                  %v785 = vphi %v342, %v766
                  %v786 = vphi %v343, %v767
                  %v787 = vphi %v344, %v768
                  %v788 = vphi %v345, %v773
              $region101: #{simsiam_transform.3} parent=96 // pred_fallthru
                %v789 = vphi 0, %v774
                %v790 = vphi 0, %v775
                %v791 = vphi 0, %v776
                %v792 = vphi 0, %v777
                %v793 = vphi 0, %v778
                %v794 = vphi 0, %v779
                %v795 = vphi 0, %v780
                %v796 = vphi 0, %v781
                %v797 = vphi 0, %v782
                %v798 = vphi 0, %v783
                %v799 = vphi 0, %v784
                %v800 = vphi 0, %v785
                %v801 = vphi 0, %v786
                %v802 = vphi 0, %v787
                %v803 = vphi 0, %v788
              %p804 = pneg %p361
              // Predicated region
              $region110: #{simsiam_transform.3} parent=96 // pred_check
                _
              $region111: #{simsiam_transform.3} parent=96 // pred_check_branch
                %806 = sbr.rel (%p361) target = $region113
              $region112: #{simsiam_transform.3} parent=96 // pred_region
                %v807 = vmul.f32 %v331, 0.2989
                %v808 = vmul.f32 %v332, 0.2989
                %v809 = vmul.f32 %v333, 0.2989
                %v810 = vmul.f32 %v334, 0.2989
                %v811 = vmul.f32 %v335, 0.2989
                %v812 = vmul.f32 %v336, 0.587
                %v813 = vmul.f32 %v337, 0.587
                %v814 = vmul.f32 %v338, 0.587
                %v815 = vmul.f32 %v339, 0.587
                %v816 = vmul.f32 %v340, 0.587
                %v817 = vadd.f32 %v807, %v812
                %v818 = vadd.f32 %v808, %v813
                %v819 = vadd.f32 %v809, %v814
                %v820 = vadd.f32 %v810, %v815
                %v821 = vadd.f32 %v811, %v816
                %v822 = vmul.f32 %v341, 0.114
                %v823 = vmul.f32 %v342, 0.114
                %v824 = vmul.f32 %v343, 0.114
                %v825 = vmul.f32 %v344, 0.114
                %v826 = vmul.f32 %v345, 0.114
                %v827 = vadd.f32 %v817, %v822
                %v828 = vadd.f32 %v818, %v823
                %v829 = vadd.f32 %v819, %v824
                %v830 = vadd.f32 %v820, %v825
                %v831 = vadd.f32 %v821, %v826
                %vm832 = vcmask 1042432
                %v833 = vsel %vm832, %v831, 0.0
                %s834 = sld [smem:[#allocation2 + $0x2]]
                %v835 = vstv %s834
                %v836 = vmul.f32 %v835, %v331
                %v837 = vmul.f32 %v835, %v332
                %v838 = vmul.f32 %v835, %v333
                %v839 = vmul.f32 %v835, %v334
                %v840 = vmul.f32 %v835, %v335
                %v841 = vmul.f32 %v835, %v336
                %v842 = vmul.f32 %v835, %v337
                %v843 = vmul.f32 %v835, %v338
                %v844 = vmul.f32 %v835, %v339
                %v845 = vmul.f32 %v835, %v340
                %v846 = vmul.f32 %v835, %v341
                %v847 = vmul.f32 %v835, %v342
                %v848 = vmul.f32 %v835, %v343
                %v849 = vmul.f32 %v835, %v344
                %v850 = vmul.f32 %v835, %v345
                %s851 = ssub.f32 1.0, %s834
                %v852 = vstv %s851
                %v853 = vmul.f32 %v852, %v827
                %v854 = vmul.f32 %v852, %v828
                %v855 = vmul.f32 %v852, %v829
                %v856 = vmul.f32 %v852, %v830
                %v857 = vmul.f32 %v852, %v833
                %v858 = vadd.f32 %v836, %v853
                %v859 = vadd.f32 %v837, %v854
                %v860 = vadd.f32 %v838, %v855
                %v861 = vadd.f32 %v839, %v856
                %v862 = vadd.f32 %v840, %v857
                %v863 = vadd.f32 %v841, %v853
                %v864 = vadd.f32 %v842, %v854
                %v865 = vadd.f32 %v843, %v855
                %v866 = vadd.f32 %v844, %v856
                %v867 = vadd.f32 %v845, %v857
                %v868 = vadd.f32 %v846, %v853
                %v869 = vadd.f32 %v847, %v854
                %v870 = vadd.f32 %v848, %v855
                %v871 = vadd.f32 %v849, %v856
                %v872 = vadd.f32 %v850, %v857
                %v873 = vmax.f32 %v858, 0.0
                %v874 = vmax.f32 %v859, 0.0
                %v875 = vmax.f32 %v860, 0.0
                %v876 = vmax.f32 %v861, 0.0
                %v877 = vmax.f32 %v862, 0.0
                %v878 = vmax.f32 %v863, 0.0
                %v879 = vmax.f32 %v864, 0.0
                %v880 = vmax.f32 %v865, 0.0
                %v881 = vmax.f32 %v866, 0.0
                %v882 = vmax.f32 %v867, 0.0
                %v883 = vmax.f32 %v868, 0.0
                %v884 = vmax.f32 %v869, 0.0
                %v885 = vmax.f32 %v870, 0.0
                %v886 = vmax.f32 %v871, 0.0
                %v887 = vmax.f32 %v872, 0.0
                %v888 = vmin.f32 %v873, 1.0
                %v889 = vmin.f32 %v874, 1.0
                %v890 = vmin.f32 %v875, 1.0
                %v891 = vmin.f32 %v876, 1.0
                %v892 = vmin.f32 %v877, 1.0
                %v893 = vmin.f32 %v878, 1.0
                %v894 = vmin.f32 %v879, 1.0
                %v895 = vmin.f32 %v880, 1.0
                %v896 = vmin.f32 %v881, 1.0
                %v897 = vmin.f32 %v882, 1.0
                %v898 = vmin.f32 %v883, 1.0
                %v899 = vmin.f32 %v884, 1.0
                %v900 = vmin.f32 %v885, 1.0
                %v901 = vmin.f32 %v886, 1.0
                %v902 = vmin.f32 %v887, 1.0
              $region113: #{simsiam_transform.3} parent=96 // pred_fallthru
                %v903 = vphi %v789, %v888
                %v904 = vphi %v790, %v889
                %v905 = vphi %v791, %v890
                %v906 = vphi %v792, %v891
                %v907 = vphi %v793, %v892
                %v908 = vphi %v794, %v893
                %v909 = vphi %v795, %v894
                %v910 = vphi %v796, %v895
                %v911 = vphi %v797, %v896
                %v912 = vphi %v798, %v897
                %v913 = vphi %v799, %v898
                %v914 = vphi %v800, %v899
                %v915 = vphi %v801, %v900
                %v916 = vphi %v802, %v901
                %v917 = vphi %v803, %v902
            $region97: #{simsiam_transform.3} parent=92 // pred_fallthru
              %v918 = vphi 0, %v903
              %v919 = vphi 0, %v904
              %v920 = vphi 0, %v905
              %v921 = vphi 0, %v906
              %v922 = vphi 0, %v907
              %v923 = vphi 0, %v908
              %v924 = vphi 0, %v909
              %v925 = vphi 0, %v910
              %v926 = vphi 0, %v911
              %v927 = vphi 0, %v912
              %v928 = vphi 0, %v913
              %v929 = vphi 0, %v914
              %v930 = vphi 0, %v915
              %v931 = vphi 0, %v916
              %v932 = vphi 0, %v917
            %p933 = pneg %p356
            // Predicated region
            $region114: #{simsiam_transform.3} parent=92 // pred_check
              _
            $region115: #{simsiam_transform.3} parent=92 // pred_check_branch
              %935 = sbr.rel (%p356) target = $region117
            $region116: #{simsiam_transform.3} parent=92 // pred_region
              %v936 = vmul.f32 %v331, 0.2989
              %v937 = vmul.f32 %v332, 0.2989
              %v938 = vmul.f32 %v333, 0.2989
              %v939 = vmul.f32 %v334, 0.2989
              %v940 = vmul.f32 %v335, 0.2989
              %v941 = vmul.f32 %v336, 0.587
              %v942 = vmul.f32 %v337, 0.587
              %v943 = vmul.f32 %v338, 0.587
              %v944 = vmul.f32 %v339, 0.587
              %v945 = vmul.f32 %v340, 0.587
              %v946 = vadd.f32 %v936, %v941
              %v947 = vadd.f32 %v937, %v942
              %v948 = vadd.f32 %v938, %v943
              %v949 = vadd.f32 %v939, %v944
              %v950 = vadd.f32 %v940, %v945
              %v951 = vmul.f32 %v341, 0.114
              %v952 = vmul.f32 %v342, 0.114
              %v953 = vmul.f32 %v343, 0.114
              %v954 = vmul.f32 %v344, 0.114
              %v955 = vmul.f32 %v345, 0.114
              %v956 = vadd.f32 %v946, %v951
              %v957 = vadd.f32 %v947, %v952
              %v958 = vadd.f32 %v948, %v953
              %v959 = vadd.f32 %v949, %v954
              %v960 = vadd.f32 %v950, %v955
              %v961 = vadd.f32 %v956, %v957
              %v962 = vadd.f32 %v961, %v958
              %v963 = vadd.f32 %v962, %v959
              %vm964 = vcmask 1042432
              %v965 = vsel %vm964, %v960, 0.0
              %v966 = vadd.f32 %v963, %v965
              %v967 = vrot.slane %v966, 4
              %v968 = vadd.f32 %v966, %v967
              %v969 = vrot.slane %v968, 2
              %v970 = vadd.f32 %v968, %v969
              %v971 = vrot.slane %v970, 1
              %v972 = vadd.f32 %v970, %v971
              %v973 = vrcp.pop 35.0
              %v974 = vmul.f32 35.0, %v973
              %v975 = vsub.f32 1.0, %v974
              %v976 = vmul.f32 %v973, %v975
              %v977 = vadd.f32 %v973, %v976
              %vm978 = vweird.f32 %v973
              %v979 = vsel %vm978, %v973, %v977
              %v980 = vmul.f32 %v972, %v979
              %s981 = sld [smem:[#allocation2 + $0x1]]
              %v982 = vstv %s981
              %v983 = vmul.f32 %v982, %v331
              %v984 = vmul.f32 %v982, %v332
              %v985 = vmul.f32 %v982, %v333
              %v986 = vmul.f32 %v982, %v334
              %v987 = vmul.f32 %v982, %v335
              %v988 = vmul.f32 %v982, %v336
              %v989 = vmul.f32 %v982, %v337
              %v990 = vmul.f32 %v982, %v338
              %v991 = vmul.f32 %v982, %v339
              %v992 = vmul.f32 %v982, %v340
              %v993 = vmul.f32 %v982, %v341
              %v994 = vmul.f32 %v982, %v342
              %v995 = vmul.f32 %v982, %v343
              %v996 = vmul.f32 %v982, %v344
              %v997 = vmul.f32 %v982, %v345
              %s998 = ssub.f32 1.0, %s981
              %v999 = vstv %s998
              %v1000 = vmul.f32 %v999, %v980
              %v1001 = vadd.f32 %v983, %v1000
              %v1002 = vadd.f32 %v984, %v1000
              %v1003 = vadd.f32 %v985, %v1000
              %v1004 = vadd.f32 %v986, %v1000
              %v1005 = vadd.f32 %v987, %v1000
              %v1006 = vadd.f32 %v988, %v1000
              %v1007 = vadd.f32 %v989, %v1000
              %v1008 = vadd.f32 %v990, %v1000
              %v1009 = vadd.f32 %v991, %v1000
              %v1010 = vadd.f32 %v992, %v1000
              %v1011 = vadd.f32 %v993, %v1000
              %v1012 = vadd.f32 %v994, %v1000
              %v1013 = vadd.f32 %v995, %v1000
              %v1014 = vadd.f32 %v996, %v1000
              %v1015 = vadd.f32 %v997, %v1000
              %v1016 = vmax.f32 %v1001, 0.0
              %v1017 = vmax.f32 %v1002, 0.0
              %v1018 = vmax.f32 %v1003, 0.0
              %v1019 = vmax.f32 %v1004, 0.0
              %v1020 = vmax.f32 %v1005, 0.0
              %v1021 = vmax.f32 %v1006, 0.0
              %v1022 = vmax.f32 %v1007, 0.0
              %v1023 = vmax.f32 %v1008, 0.0
              %v1024 = vmax.f32 %v1009, 0.0
              %v1025 = vmax.f32 %v1010, 0.0
              %v1026 = vmax.f32 %v1011, 0.0
              %v1027 = vmax.f32 %v1012, 0.0
              %v1028 = vmax.f32 %v1013, 0.0
              %v1029 = vmax.f32 %v1014, 0.0
              %v1030 = vmax.f32 %v1015, 0.0
              %v1031 = vmin.f32 %v1016, 1.0
              %v1032 = vmin.f32 %v1017, 1.0
              %v1033 = vmin.f32 %v1018, 1.0
              %v1034 = vmin.f32 %v1019, 1.0
              %v1035 = vmin.f32 %v1020, 1.0
              %v1036 = vmin.f32 %v1021, 1.0
              %v1037 = vmin.f32 %v1022, 1.0
              %v1038 = vmin.f32 %v1023, 1.0
              %v1039 = vmin.f32 %v1024, 1.0
              %v1040 = vmin.f32 %v1025, 1.0
              %v1041 = vmin.f32 %v1026, 1.0
              %v1042 = vmin.f32 %v1027, 1.0
              %v1043 = vmin.f32 %v1028, 1.0
              %v1044 = vmin.f32 %v1029, 1.0
              %v1045 = vmin.f32 %v1030, 1.0
            $region117: #{simsiam_transform.3} parent=92 // pred_fallthru
              %v1046 = vphi %v918, %v1031
              %v1047 = vphi %v919, %v1032
              %v1048 = vphi %v920, %v1033
              %v1049 = vphi %v921, %v1034
              %v1050 = vphi %v922, %v1035
              %v1051 = vphi %v923, %v1036
              %v1052 = vphi %v924, %v1037
              %v1053 = vphi %v925, %v1038
              %v1054 = vphi %v926, %v1039
              %v1055 = vphi %v927, %v1040
              %v1056 = vphi %v928, %v1041
              %v1057 = vphi %v929, %v1042
              %v1058 = vphi %v930, %v1043
              %v1059 = vphi %v931, %v1044
              %v1060 = vphi %v932, %v1045
          $region93: #{simsiam_transform.3} parent=86 // pred_fallthru
            %v1061 = vphi 0, %v1046
            %v1062 = vphi 0, %v1047
            %v1063 = vphi 0, %v1048
            %v1064 = vphi 0, %v1049
            %v1065 = vphi 0, %v1050
            %v1066 = vphi 0, %v1051
            %v1067 = vphi 0, %v1052
            %v1068 = vphi 0, %v1053
            %v1069 = vphi 0, %v1054
            %v1070 = vphi 0, %v1055
            %v1071 = vphi 0, %v1056
            %v1072 = vphi 0, %v1057
            %v1073 = vphi 0, %v1058
            %v1074 = vphi 0, %v1059
            %v1075 = vphi 0, %v1060
          %p1076 = pneg %p351
          // Predicated region
          $region118: #{simsiam_transform.3} parent=86 // pred_check
            _
          $region119: #{simsiam_transform.3} parent=86 // pred_check_branch
            %1078 = sbr.rel (%p351) target = $region121
          $region120: #{simsiam_transform.3} parent=86 // pred_region
            %s1079 = sld [smem:[#allocation2]]
            %v1080 = vstv %s1079
            %v1081 = vmul.f32 %v1080, %v331
            %v1082 = vmul.f32 %v1080, %v332
            %v1083 = vmul.f32 %v1080, %v333
            %v1084 = vmul.f32 %v1080, %v334
            %v1085 = vmul.f32 %v1080, %v335
            %v1086 = vmul.f32 %v1080, %v336
            %v1087 = vmul.f32 %v1080, %v337
            %v1088 = vmul.f32 %v1080, %v338
            %v1089 = vmul.f32 %v1080, %v339
            %v1090 = vmul.f32 %v1080, %v340
            %v1091 = vmul.f32 %v1080, %v341
            %v1092 = vmul.f32 %v1080, %v342
            %v1093 = vmul.f32 %v1080, %v343
            %v1094 = vmul.f32 %v1080, %v344
            %v1095 = vmul.f32 %v1080, %v345
            %v1096 = vmax.f32 %v1081, 0.0
            %v1097 = vmax.f32 %v1082, 0.0
            %v1098 = vmax.f32 %v1083, 0.0
            %v1099 = vmax.f32 %v1084, 0.0
            %v1100 = vmax.f32 %v1085, 0.0
            %v1101 = vmax.f32 %v1086, 0.0
            %v1102 = vmax.f32 %v1087, 0.0
            %v1103 = vmax.f32 %v1088, 0.0
            %v1104 = vmax.f32 %v1089, 0.0
            %v1105 = vmax.f32 %v1090, 0.0
            %v1106 = vmax.f32 %v1091, 0.0
            %v1107 = vmax.f32 %v1092, 0.0
            %v1108 = vmax.f32 %v1093, 0.0
            %v1109 = vmax.f32 %v1094, 0.0
            %v1110 = vmax.f32 %v1095, 0.0
            %v1111 = vmin.f32 %v1096, 1.0
            %v1112 = vmin.f32 %v1097, 1.0
            %v1113 = vmin.f32 %v1098, 1.0
            %v1114 = vmin.f32 %v1099, 1.0
            %v1115 = vmin.f32 %v1100, 1.0
            %v1116 = vmin.f32 %v1101, 1.0
            %v1117 = vmin.f32 %v1102, 1.0
            %v1118 = vmin.f32 %v1103, 1.0
            %v1119 = vmin.f32 %v1104, 1.0
            %v1120 = vmin.f32 %v1105, 1.0
            %v1121 = vmin.f32 %v1106, 1.0
            %v1122 = vmin.f32 %v1107, 1.0
            %v1123 = vmin.f32 %v1108, 1.0
            %v1124 = vmin.f32 %v1109, 1.0
            %v1125 = vmin.f32 %v1110, 1.0
          $region121: #{simsiam_transform.3} parent=86 // pred_fallthru
            %v1126 = vphi %v1061, %v1111
            %v1127 = vphi %v1062, %v1112
            %v1128 = vphi %v1063, %v1113
            %v1129 = vphi %v1064, %v1114
            %v1130 = vphi %v1065, %v1115
            %v1131 = vphi %v1066, %v1116
            %v1132 = vphi %v1067, %v1117
            %v1133 = vphi %v1068, %v1118
            %v1134 = vphi %v1069, %v1119
            %v1135 = vphi %v1070, %v1120
            %v1136 = vphi %v1071, %v1121
            %v1137 = vphi %v1072, %v1122
            %v1138 = vphi %v1073, %v1123
            %v1139 = vphi %v1074, %v1124
            %v1140 = vphi %v1075, %v1125
        $region87: #{simsiam_transform.3} parent=69 // loop_footer
          %s330 = sadd.s32 1, %s326
        $region88: #{simsiam_transform.3} parent=69 // loop_footer_branch
          %325 = sbr.rel target = $region84
        $region89: #{simsiam_transform.3} parent=69 // loop_exit
          _
        %s1141 = sld [smem:[#allocation4 + $0x4]]
        %p1142 = scmp.eq.s32.totalorder %s1141, 1
        %v1143 = vmul.f32 %v331, 0.2989
        %v1144 = vmul.f32 %v332, 0.2989
        %v1145 = vmul.f32 %v333, 0.2989
        %v1146 = vmul.f32 %v334, 0.2989
        %v1147 = vmul.f32 %v335, 0.2989
        %v1148 = vmul.f32 %v336, 0.587
        %v1149 = vmul.f32 %v337, 0.587
        %v1150 = vmul.f32 %v338, 0.587
        %v1151 = vmul.f32 %v339, 0.587
        %v1152 = vmul.f32 %v340, 0.587
        %v1153 = vadd.f32 %v1143, %v1148
        %v1154 = vadd.f32 %v1144, %v1149
        %v1155 = vadd.f32 %v1145, %v1150
        %v1156 = vadd.f32 %v1146, %v1151
        %v1157 = vadd.f32 %v1147, %v1152
        %v1158 = vmul.f32 %v341, 0.114
        %v1159 = vmul.f32 %v342, 0.114
        %v1160 = vmul.f32 %v343, 0.114
        %v1161 = vmul.f32 %v344, 0.114
        %v1162 = vmul.f32 %v345, 0.114
        %v1163 = vadd.f32 %v1153, %v1158
        %v1164 = vadd.f32 %v1154, %v1159
        %v1165 = vadd.f32 %v1155, %v1160
        %v1166 = vadd.f32 %v1156, %v1161
        %v1167 = vadd.f32 %v1157, %v1162
        %vm1168 = vcmask 1042432
        %v1169 = vsel %vm1168, %v1167, 0.0
        %s1170 = scalar_select %p1142, 1, 0
        %v1171 = vstv %s1170
        %vm1172 = vcmp.eq.s32.totalorder %v1171, 1
        %v1173 = vsel %vm1172, %v1163, %v331
        %v1174 = vsel %vm1172, %v1164, %v332
        %v1175 = vsel %vm1172, %v1165, %v333
        %v1176 = vsel %vm1172, %v1166, %v334
        %v1177 = vsel %vm1172, %v1169, %v335
        %v1178 = vsel %vm1172, %v1163, %v336
        %v1179 = vsel %vm1172, %v1164, %v337
        %v1180 = vsel %vm1172, %v1165, %v338
        %v1181 = vsel %vm1172, %v1166, %v339
        %v1182 = vsel %vm1172, %v1169, %v340
        %v1183 = vsel %vm1172, %v1163, %v341
        %v1184 = vsel %vm1172, %v1164, %v342
        %v1185 = vsel %vm1172, %v1165, %v343
        %v1186 = vsel %vm1172, %v1166, %v344
        %v1187 = vsel %vm1172, %v1169, %v345
        %v1188 = vld [vmem:[%s2] sm:$0xff]
        %v1189 = vld [vmem:[%s2 + $0x8] sm:$0xff]
        %v1190 = vld [vmem:[%s2 + $0x10] sm:$0xff]
        %v1191 = vld [vmem:[%s2 + $0x18] sm:$0xff]
        %v1192 = vld [vmem:[%s2 + $0x20] sm:$0xff]
        %v1193 = vld [vmem:[%s2 + $0x28] sm:$0xff]
        %v1194 = vld [vmem:[%s2 + $0x30] sm:$0xff]
        %v1195 = vld [vmem:[%s2 + $0x38] sm:$0xff]
        %v1196 = vld [vmem:[%s2 + $0x40] sm:$0xff]
        %v1197 = vld [vmem:[%s2 + $0x48] sm:$0xff]
        %v1198 = vld [vmem:[%s2 + $0x50] sm:$0xff]
        %v1199 = vld [vmem:[%s2 + $0x58] sm:$0xff]
        %v1200 = vld [vmem:[%s2 + $0x60] sm:$0xff]
        %v1201 = vld [vmem:[%s2 + $0x68] sm:$0xff]
        %v1202 = vld [vmem:[%s2 + $0x70] sm:$0xff]
        %vm1203 = vcmask 982016
        %v1205 = vsel %vm1203, %v1188, 0
        %v1208 = vsel %vm1203, %v1189, 0
        %v1211 = vsel %vm1203, %v1190, 0
        %v1214 = vsel %vm1203, %v1191, 0
        %v1217 = vsel %vm1203, %v1192, 0
        %v1220 = vsel %vm1203, %v1193, 0
        %v1223 = vsel %vm1203, %v1194, 0
        %v1226 = vsel %vm1203, %v1195, 0
        %v1229 = vsel %vm1203, %v1196, 0
        %v1232 = vsel %vm1203, %v1197, 0
        %v1235 = vsel %vm1203, %v1198, 0
        %v1238 = vsel %vm1203, %v1199, 0
        %v1241 = vsel %vm1203, %v1200, 0
        %v1244 = vsel %vm1203, %v1201, 0
        %v1247 = vsel %vm1203, %v1202, 0
        %1249 = vmatpush.msra.mxu0 0.0
        %1250 = vmatpush.msra.mxu0 %v1187
        %1251 = vmatpush.msra.mxu0 %v1186
        %1252 = vmatpush.msra.mxu0 %v1185
        %1253 = vmatpush.msra.mxu0 %v1184
        %1254 = vmatpush.msra.mxu0 %v1183
        %1255 = vmatpush.msra.mxu0 %v1182
        %1256 = vmatpush.msra.mxu0 %v1181
        %1257 = vmatpush.msra.mxu0 %v1180
        %1258 = vmatpush.msra.mxu0 %v1179
        %1259 = vmatpush.msra.mxu0 %v1178
        %1260 = vmatpush.msra.mxu0 %v1177
        %1261 = vmatpush.msra.mxu0 %v1176
        %1262 = vmatpush.msra.mxu0 %v1175
        %1263 = vmatpush.msra.mxu0 %v1174
        %1264 = vmatpush.msra.mxu0 %v1173
        %1265 = vmatmul.f32.gmra.mxu0 %v1205
        %v1266 = vpop.f32.mrf.mxu0
        %v1267 = vadd.f32 0.0, %v1266
        %1268 = vmatmul.f32.gmra.mxu0 %v1208
        %v1269 = vpop.f32.mrf.mxu0
        %v1270 = vadd.f32 0.0, %v1269
        %1271 = vmatmul.f32.gmra.mxu0 %v1211
        %v1272 = vpop.f32.mrf.mxu0
        %v1273 = vadd.f32 0.0, %v1272
        %1274 = vmatmul.f32.gmra.mxu0 %v1214
        %v1275 = vpop.f32.mrf.mxu0
        %v1276 = vadd.f32 0.0, %v1275
        %1277 = vmatmul.f32.gmra.mxu0 %v1217
        %v1278 = vpop.f32.mrf.mxu0
        %v1279 = vadd.f32 0.0, %v1278
        %1280 = vmatmul.f32.gmra.mxu0 %v1220
        %v1281 = vpop.f32.mrf.mxu0
        %v1282 = vadd.f32 0.0, %v1281
        %1283 = vmatmul.f32.gmra.mxu0 %v1223
        %v1284 = vpop.f32.mrf.mxu0
        %v1285 = vadd.f32 0.0, %v1284
        %1286 = vmatmul.f32.gmra.mxu0 %v1226
        %v1287 = vpop.f32.mrf.mxu0
        %v1288 = vadd.f32 0.0, %v1287
        %1289 = vmatmul.f32.gmra.mxu0 %v1229
        %v1290 = vpop.f32.mrf.mxu0
        %v1291 = vadd.f32 0.0, %v1290
        %1292 = vmatmul.f32.gmra.mxu0 %v1232
        %v1293 = vpop.f32.mrf.mxu0
        %v1294 = vadd.f32 0.0, %v1293
        %1295 = vmatmul.f32.gmra.mxu0 %v1235
        %v1296 = vpop.f32.mrf.mxu0
        %v1297 = vadd.f32 0.0, %v1296
        %1298 = vmatmul.f32.gmra.mxu0 %v1238
        %v1299 = vpop.f32.mrf.mxu0
        %v1300 = vadd.f32 0.0, %v1299
        %1301 = vmatmul.f32.gmra.mxu0 %v1241
        %v1302 = vpop.f32.mrf.mxu0
        %v1303 = vadd.f32 0.0, %v1302
        %1304 = vmatmul.f32.gmra.mxu0 %v1244
        %v1305 = vpop.f32.mrf.mxu0
        %v1306 = vadd.f32 0.0, %v1305
        %1307 = vmatmul.f32.gmra.mxu0 %v1247
        %v1308 = vpop.f32.mrf.mxu0
        %v1309 = vadd.f32 0.0, %v1308
        %1310 = vdwg.mxu0
        %s1311 = sld [smem:[#allocation4 + $0x5]]
        %p1312 = scmp.eq.s32.totalorder %s1311, 1
        %s1313 = scalar_select %p1312, 1, 0
        %v1314 = vstv %s1313
        %vm1315 = vcmp.eq.s32.totalorder %v1314, 1
        %v1316 = vsel %vm1315, %v1267, %v1173
        %v1317 = vsel %vm1315, %v1270, %v1174
        %v1318 = vsel %vm1315, %v1273, %v1175
        %v1319 = vsel %vm1315, %v1276, %v1176
        %v1320 = vsel %vm1315, %v1279, %v1177
        %v1321 = vsel %vm1315, %v1282, %v1178
        %v1322 = vsel %vm1315, %v1285, %v1179
        %v1323 = vsel %vm1315, %v1288, %v1180
        %v1324 = vsel %vm1315, %v1291, %v1181
        %v1325 = vsel %vm1315, %v1294, %v1182
        %v1326 = vsel %vm1315, %v1297, %v1183
        %v1327 = vsel %vm1315, %v1300, %v1184
        %v1328 = vsel %vm1315, %v1303, %v1185
        %v1329 = vsel %vm1315, %v1306, %v1186
        %v1330 = vsel %vm1315, %v1309, %v1187
        %1331 = vst [vmem:[%s309] sm:$0xff] %v1316
        %1332 = vst [vmem:[%s309 + $0x8] sm:$0xff] %v1317
        %1333 = vst [vmem:[%s309 + $0x10] sm:$0xff] %v1318
        %1334 = vst [vmem:[%s309 + $0x18] sm:$0xff] %v1319
        %1335 = vst [vmem:[%s309 + $0x20] sm:$0xff] %v1320
        %1336 = vst [vmem:[%s309 + $0x28] sm:$0xff] %v1321
        %1337 = vst [vmem:[%s309 + $0x30] sm:$0xff] %v1322
        %1338 = vst [vmem:[%s309 + $0x38] sm:$0xff] %v1323
        %1339 = vst [vmem:[%s309 + $0x40] sm:$0xff] %v1324
        %1340 = vst [vmem:[%s309 + $0x48] sm:$0xff] %v1325
        %1341 = vst [vmem:[%s309 + $0x50] sm:$0xff] %v1326
        %1342 = vst [vmem:[%s309 + $0x58] sm:$0xff] %v1327
        %1343 = vst [vmem:[%s309 + $0x60] sm:$0xff] %v1328
        %1344 = vst [vmem:[%s309 + $0x68] sm:$0xff] %v1329
        %1345 = vst [vmem:[%s309 + $0x70] sm:$0xff] %v1330
        %s1346 = sand.u32 %s114, 1
        %s1347 = sand.u32 %s114, 1
        %s1348 = smul.addr %s1347, 120
        %s1349 = scalar_lea.vmem [#allocation7], %s1348
        // Predicated region
        $region122: #{simsiam_transform.3} parent=69 // pred_check
          %p1350 = pneg %p124
        $region123: #{simsiam_transform.3} parent=69 // pred_check_branch
          %1352 = sbr.rel (%p1350) target = $region125
        $region124: #{simsiam_transform.3} parent=69 // pred_region
          %s1353 = smul.addr %s17, 8
          %s1354 = scalar_lea.vmem %s4, %s1353
          // Predicated region
          $region126: #{simsiam_transform.3} parent=124 // pred_check
            _
          $region127: #{simsiam_transform.3} parent=124 // pred_check_branch
            %1356 = sbr.rel (0) target = $region129
          $region128: #{simsiam_transform.3} parent=124 // pred_region
            // Predicated region
            $region130: #{simsiam_transform.3} parent=128 // pred_check
              _
            $region131: #{simsiam_transform.3} parent=128 // pred_check_branch
              %1358 = sbr.rel (0) target = $region133
            $region132: #{simsiam_transform.3} parent=128 // pred_region
              // Predicated region
              $region145: #{simsiam_transform.3} parent=132 // pred_check
                _
              $region146: #{simsiam_transform.3} parent=132 // pred_check_branch
                %1402 = sbr.rel (0) target = $region148
              $region147: #{simsiam_transform.3} parent=132 // pred_region
                loop: start=0, step=1, limit=1
                $region149: #{simsiam_transform.3} parent=147 // loop_pre_header
                  _
                $region150: #{simsiam_transform.3} parent=147 // loop_header
                  %s1404 = sphi 0, %s1408
                  %p1405 = scmp.ge.s32.totalorder %s1404, 1
                  %s1409 = sphi %s1349, %s1349
                  %s1410 = sphi %s1354, %s1354
                $region151: #{simsiam_transform.3} parent=147 // loop_header_branch
                  %1407 = sbr.rel (%p1405) target = $region155
                $region152: #{simsiam_transform.3} parent=147 // loop_body
                  %v1411 = vld [vmem:[%s1409] sm:$0xff]
                  %1412 = vst [vmem:[%s1410] sm:$0xff] %v1411
                  %v1413 = vld [vmem:[%s1409 + $0x8] sm:$0xff]
                  %1414 = vst [vmem:[%s1410 + $0x10] sm:$0xff] %v1413
                  %v1415 = vld [vmem:[%s1409 + $0x10] sm:$0xff]
                  %1416 = vst [vmem:[%s1410 + $0x20] sm:$0xff] %v1415
                  %v1417 = vld [vmem:[%s1409 + $0x18] sm:$0xff]
                  %1418 = vst [vmem:[%s1410 + $0x30] sm:$0xff] %v1417
                  %v1419 = vld [vmem:[%s1409 + $0x20] sm:$0xff]
                  %1420 = vst [vmem:[%s1410 + $0x40] sm:$0xff] %v1419
                  %v1421 = vld [vmem:[%s1409 + $0x28] sm:$0xff]
                  %1422 = vst [vmem:[%s1410 + $0x50] sm:$0xff] %v1421
                  %v1423 = vld [vmem:[%s1409 + $0x30] sm:$0xff]
                  %1424 = vst [vmem:[%s1410 + $0x60] sm:$0xff] %v1423
                  %v1425 = vld [vmem:[%s1409 + $0x38] sm:$0xff]
                  %1426 = vst [vmem:[%s1410 + $0x70] sm:$0xff] %v1425
                  %v1427 = vld [vmem:[%s1409 + $0x40] sm:$0xff]
                  %1428 = vst [vmem:[%s1410 + $0x80] sm:$0xff] %v1427
                  %v1429 = vld [vmem:[%s1409 + $0x48] sm:$0xff]
                  %1430 = vst [vmem:[%s1410 + $0x90] sm:$0xff] %v1429
                  %v1431 = vld [vmem:[%s1409 + $0x50] sm:$0xff]
                  %1432 = vst [vmem:[%s1410 + $0xa0] sm:$0xff] %v1431
                  %v1433 = vld [vmem:[%s1409 + $0x58] sm:$0xff]
                  %1434 = vst [vmem:[%s1410 + $0xb0] sm:$0xff] %v1433
                  %v1435 = vld [vmem:[%s1409 + $0x60] sm:$0xff]
                  %1436 = vst [vmem:[%s1410 + $0xc0] sm:$0xff] %v1435
                  %v1437 = vld [vmem:[%s1409 + $0x68] sm:$0xff]
                  %1438 = vst [vmem:[%s1410 + $0xd0] sm:$0xff] %v1437
                  %v1439 = vld [vmem:[%s1409 + $0x70] sm:$0xff]
                  %1440 = vst [vmem:[%s1410 + $0xe0] sm:$0xff] %v1439
                $region153: #{simsiam_transform.3} parent=147 // loop_footer
                  %s1408 = sadd.s32 1, %s1404
                $region154: #{simsiam_transform.3} parent=147 // loop_footer_branch
                  %1403 = sbr.rel target = $region150
                $region155: #{simsiam_transform.3} parent=147 // loop_exit
                  _
              $region148: #{simsiam_transform.3} parent=132 // pred_fallthru
                _
              // Predicated region
              $region156: #{simsiam_transform.3} parent=132 // pred_check
                _
              $region157: #{simsiam_transform.3} parent=132 // pred_check_branch
                %1442 = sbr.rel target = $region159
              $region158: #{simsiam_transform.3} parent=132 // pred_region
                _
              $region159: #{simsiam_transform.3} parent=132 // pred_fallthru
                _
            $region133: #{simsiam_transform.3} parent=128 // pred_fallthru
              _
            // Predicated region
            $region134: #{simsiam_transform.3} parent=128 // pred_check
              _
            $region135: #{simsiam_transform.3} parent=128 // pred_check_branch
              %1360 = sbr.rel target = $region137
            $region136: #{simsiam_transform.3} parent=128 // pred_region
              %s1362 = ssub.s32 256, 1
              loop: start=0, step=1, limit=1
              $region138: #{simsiam_transform.3} parent=136 // loop_pre_header
                _
              $region139: #{simsiam_transform.3} parent=136 // loop_header
                %s1364 = sphi 0, %s1368
                %p1365 = scmp.ge.s32.totalorder %s1364, 1
                %s1369 = sphi %s1349, %s1349
                %s1370 = sphi %s1354, %s1354
              $region140: #{simsiam_transform.3} parent=136 // loop_header_branch
                %1367 = sbr.rel (%p1365) target = $region144
              $region141: #{simsiam_transform.3} parent=136 // loop_body
                %v1371 = vld [vmem:[%s1369] sm:%s1362]
                %1372 = vst [vmem:[%s1370] sm:%s1362] %v1371
                %v1373 = vld [vmem:[%s1369 + $0x8] sm:%s1362]
                %1374 = vst [vmem:[%s1370 + $0x10] sm:%s1362] %v1373
                %v1375 = vld [vmem:[%s1369 + $0x10] sm:%s1362]
                %1376 = vst [vmem:[%s1370 + $0x20] sm:%s1362] %v1375
                %v1377 = vld [vmem:[%s1369 + $0x18] sm:%s1362]
                %1378 = vst [vmem:[%s1370 + $0x30] sm:%s1362] %v1377
                %v1379 = vld [vmem:[%s1369 + $0x20] sm:%s1362]
                %1380 = vst [vmem:[%s1370 + $0x40] sm:%s1362] %v1379
                %v1381 = vld [vmem:[%s1369 + $0x28] sm:%s1362]
                %1382 = vst [vmem:[%s1370 + $0x50] sm:%s1362] %v1381
                %v1383 = vld [vmem:[%s1369 + $0x30] sm:%s1362]
                %1384 = vst [vmem:[%s1370 + $0x60] sm:%s1362] %v1383
                %v1385 = vld [vmem:[%s1369 + $0x38] sm:%s1362]
                %1386 = vst [vmem:[%s1370 + $0x70] sm:%s1362] %v1385
                %v1387 = vld [vmem:[%s1369 + $0x40] sm:%s1362]
                %1388 = vst [vmem:[%s1370 + $0x80] sm:%s1362] %v1387
                %v1389 = vld [vmem:[%s1369 + $0x48] sm:%s1362]
                %1390 = vst [vmem:[%s1370 + $0x90] sm:%s1362] %v1389
                %v1391 = vld [vmem:[%s1369 + $0x50] sm:%s1362]
                %1392 = vst [vmem:[%s1370 + $0xa0] sm:%s1362] %v1391
                %v1393 = vld [vmem:[%s1369 + $0x58] sm:%s1362]
                %1394 = vst [vmem:[%s1370 + $0xb0] sm:%s1362] %v1393
                %v1395 = vld [vmem:[%s1369 + $0x60] sm:%s1362]
                %1396 = vst [vmem:[%s1370 + $0xc0] sm:%s1362] %v1395
                %v1397 = vld [vmem:[%s1369 + $0x68] sm:%s1362]
                %1398 = vst [vmem:[%s1370 + $0xd0] sm:%s1362] %v1397
                %v1399 = vld [vmem:[%s1369 + $0x70] sm:%s1362]
                %1400 = vst [vmem:[%s1370 + $0xe0] sm:%s1362] %v1399
              $region142: #{simsiam_transform.3} parent=136 // loop_footer
                %s1368 = sadd.s32 1, %s1364
              $region143: #{simsiam_transform.3} parent=136 // loop_footer_branch
                %1363 = sbr.rel target = $region139
              $region144: #{simsiam_transform.3} parent=136 // loop_exit
                _
            $region137: #{simsiam_transform.3} parent=128 // pred_fallthru
              _
          $region129: #{simsiam_transform.3} parent=124 // pred_fallthru
            _
          %1443 = vnop
        $region125: #{simsiam_transform.3} parent=69 // pred_fallthru
          _
      $region70: #{simsiam_transform.3} parent=5 // pred_fallthru
        _
      %p1444 = scmp.le.s32.totalorder 2, %s12
      // Predicated region
      $region160: #{simsiam_transform.3} parent=5 // pred_check
        %p1445 = pneg %p1444
      $region161: #{simsiam_transform.3} parent=5 // pred_check_branch
        %1447 = sbr.rel (%p1445) target = $region163
      $region162: #{simsiam_transform.3} parent=5 // pred_region
        %s1448 = ssub.s32 %s12, 2
        // Predicated region
        $region164: #{simsiam_transform.3} parent=162 // pred_check
          %p1449 = pneg %p130
        $region165: #{simsiam_transform.3} parent=162 // pred_check_branch
          %1451 = sbr.rel (%p1449) target = $region167
        $region166: #{simsiam_transform.3} parent=162 // pred_region
          %s1452 = sand.u32 %s115, 1
          %s1453 = sand.u32 %s115, 1
          %s1454 = smul.addr %s1453, 120
          %s1455 = scalar_lea.vmem [#allocation7], %s1454
        $region167: #{simsiam_transform.3} parent=162 // pred_fallthru
          _
      $region163: #{simsiam_transform.3} parent=5 // pred_fallthru
        _
    $region6: #{simsiam_transform.3} parent=1 // loop_footer
      %s16 = sadd.s32 1, %s12
    $region7: #{simsiam_transform.3} parent=1 // loop_footer_branch
      %11 = sbr.rel target = $region3
    $region8: #{simsiam_transform.3} parent=1 // loop_exit
      _
    %1456 = vsyncpa [#allocation3], 1
    %s1457 = scalar_lea.sflag [#allocation3], 1
    %1458 = vsyncpa %s1457, 1
    %1459 = vsyncpa [#allocation5], 1

</llo_original>
